<compile_context>
chip_gen: v7x
topology: tpu7x:2x2x1
jax: 0.10.0
libtpu: 0.0.40
codegen_flags: <defaults>
</compile_context>

<pallas_src>
import functools

import jax
import jax.numpy as jnp
from jax.experimental import pallas as pl
from jax.experimental.pallas import tpu as pltpu


def _fused_cnn_kernel(x_ref,
                      w1_ref, s1_ref, t1_ref,
                      w2_ref, s2_ref, t2_ref,
                      w3_ref, s3_ref, t3_ref,
                      w4_ref, s4_ref, t4_ref,
                      o_ref,
                      pad_scr, col_scr,
                      *, length, layer_cfg):
    """All four conv + BN + LeakyReLU layers for one batch element, in VMEM."""
    w_refs = (w1_ref, w2_ref, w3_ref, w4_ref)
    s_refs = (s1_ref, s2_ref, s3_ref, s4_ref)
    t_refs = (t1_ref, t2_ref, t3_ref, t4_ref)

    h = x_ref[0]                                        # (L, C0) f32
    for idx, (ks, pad, c_in, c_out, act) in enumerate(layer_cfg):
        # In-kernel zero padding: memset the (shared) pad buffer, then place
        # the body in rows [pad, pad+L).  Re-zeroed per layer since pad/width
        # differ between layers.
        pad_scr[...] = jnp.zeros_like(pad_scr)
        pad_scr[pad:pad + length, :c_in] = h
        # im2col: pack the KS shifted windows side by side -> (L, KS*C_in).
        for t in range(ks):                             # ks is 3/5/7: unrolled
            col_scr[:, t * c_in:(t + 1) * c_in] = pad_scr[t:t + length, :c_in]
        cols = col_scr[:, :ks * c_in]
        # One MXU matmul per layer; bf16 inputs, f32 accumulation.
        y = jnp.dot(cols.astype(jnp.bfloat16), w_refs[idx][...],
                    preferred_element_type=jnp.float32)
        # Folded eval-BatchNorm affine (+ conv bias) and LeakyReLU(0.3) in f32.
        y = y * s_refs[idx][...] + t_refs[idx][...]
        if act:
            y = jnp.where(y >= 0.0, y, 0.3 * y)
        h = y
    o_ref[0] = h.astype(o_ref.dtype)


@functools.partial(jax.jit, static_argnames=("layer_cfg", "Nt", "Nr", "dk", "K"))
def beamform_net_forward(x, weights, *, layer_cfg, Nt, Nr, dk, K):
    """x: (B, Nt*Nr*K*2) -> (B, dk*K*2*Nt), matching the PyTorch module."""
    c0 = Nr * 2 * K
    c4 = dk * 2 * K
    L = Nt
    # PyTorch: reshape(-1, Nt, Nr*K*2).permute(0,2,1) -> (B, C, L) for conv.
    # We keep (B, L, C) so channels sit on the lane axis.
    h = x.reshape(-1, L, c0).astype(jnp.float32)
    b = h.shape[0]

    max_pad = max(cfg[1] for cfg in layer_cfg)
    c_max = max(max(cfg[2], cfg[3]) for cfg in layer_cfg)
    kc_max = max(cfg[0] * cfg[2] for cfg in layer_cfg)

    in_specs = [pl.BlockSpec((1, L, c0), lambda i: (i, 0, 0))]
    for (ks, pad, c_in, c_out, act) in layer_cfg:
        # Constant index maps -> weights/scale/shift stay resident across the
        # batch grid steps (fetched from HBM only once).
        in_specs += [
            pl.BlockSpec((ks * c_in, c_out), lambda i: (0, 0)),
            pl.BlockSpec((1, c_out), lambda i: (0, 0)),
            pl.BlockSpec((1, c_out), lambda i: (0, 0)),
        ]

    kernel = functools.partial(_fused_cnn_kernel, length=L, layer_cfg=layer_cfg)

    out3 = pl.pallas_call(
        kernel,
        out_shape=jax.ShapeDtypeStruct((b, L, c4), jnp.float32),
        grid_spec=pltpu.PrefetchScalarGridSpec(
            num_scalar_prefetch=0,
            grid=(b,),
            in_specs=in_specs,
            out_specs=pl.BlockSpec((1, L, c4), lambda i: (i, 0, 0)),
            scratch_shapes=[
                pltpu.VMEM((L + 2 * max_pad, c_max), jnp.float32),  # padded act
                pltpu.VMEM((L, kc_max), jnp.float32),               # im2col cols
            ],
        ),
        compiler_params=pltpu.CompilerParams(
            dimension_semantics=("parallel",)),
    )(h, *weights)

    # PyTorch: permute(0,2,1).reshape(-1, dk*K*2*Nt).  Our (B, Nt, dk*2*K) is
    # already in that layout; the flatten is a contiguous (no-copy) reshape.
    return out3.reshape(-1, dk * K * 2 * Nt)


def _make_conv_params(key, c_in, c_out, ks):
    """Deterministic weight/bias init (stands in for PyTorch's default init)."""
    kw, kb = jax.random.split(key)
    bound = 1.0 / jnp.sqrt(float(c_in * ks))
    # PyTorch layout (C_out, C_in, KS) -> im2col layout (KS*C_in, C_out) with
    # row index t*C_in + i, matching col_scr[:, t*C_in + i] = x_pad[l+t, i].
    w_oik = jax.random.uniform(kw, (c_out, c_in, ks), jnp.float32, -bound, bound)
    w_im2col = jnp.transpose(w_oik, (2, 1, 0)).reshape(ks * c_in, c_out)
    bias = jax.random.uniform(kb, (c_out,), jnp.float32, -bound, bound)
    return w_im2col, bias


def _make_bn_params(key, c):
    kg, kb, km, kv = jax.random.split(key, 4)
    gamma = 1.0 + 0.1 * jax.random.normal(kg, (c,), jnp.float32)
    beta = 0.1 * jax.random.normal(kb, (c,), jnp.float32)
    mean = 0.1 * jax.random.normal(km, (c,), jnp.float32)
    var = 1.0 + 0.1 * jax.random.uniform(kv, (c,), jnp.float32)
    return gamma, beta, mean, var


def _fold_bn(bias, gamma, beta, mean, var, eps=1e-5):
    """Fold conv bias + eval-mode BatchNorm into per-channel scale/shift."""
    scale = gamma / jnp.sqrt(var + eps)
    shift = (bias - mean) * scale + beta
    return scale.reshape(1, -1), shift.reshape(1, -1)


def init_beamform_params(key, Nt, Nr, dk, K):
    # (ks, pad, c_in, c_out, has_bn_and_act) for CNN1..CNN4.
    layer_cfg = (
        (7, 3, Nr * 2 * K, Nr * 4 * K, True),
        (5, 2, Nr * 4 * K, Nr * 2 * K, True),
        (3, 1, Nr * 2 * K, Nr * 2 * K, True),
        (3, 1, Nr * 2 * K, dk * 2 * K, False),
    )
    keys = jax.random.split(key, 2 * len(layer_cfg))
    weights = []
    for li, (ks, pad, c_in, c_out, act) in enumerate(layer_cfg):
        w, bias = _make_conv_params(keys[2 * li], c_in, c_out, ks)
        if act:
            scale, shift = _fold_bn(bias, *_make_bn_params(keys[2 * li + 1], c_out))
        else:
            # CNN4: no BN, no activation -> scale=1, shift=bias.
            scale = jnp.ones((1, c_out), jnp.float32)
            shift = bias.reshape(1, -1)
        # Weights stored bf16 for the MXU; BN scale/shift stay f32.
        weights += [w.astype(jnp.bfloat16), scale, shift]
    return layer_cfg, tuple(weights)


if __name__ == "__main__":
    Nt, Nr, dk, K = 16, 4, 2, 4   # channels: 32 -> 64 -> 32 -> 32 -> 16
    batch = 2

    key = jax.random.PRNGKey(0)
    k_x, k_p = jax.random.split(key)
    x = jax.random.normal(k_x, (batch, Nt * Nr * K * 2), jnp.float32)

    layer_cfg, weights = init_beamform_params(k_p, Nt, Nr, dk, K)
    out = beamform_net_forward(x, weights, layer_cfg=layer_cfg,
                               Nt=Nt, Nr=Nr, dk=dk, K=K)
    out = jax.block_until_ready(out)

    assert out.shape == (batch, dk * K * 2 * Nt), out.shape
    assert jnp.all(jnp.isfinite(out))
    print("KERNEL_OK")
</pallas_src>

<mosaic_0001>
module attributes {stable_mosaic.version = 11 : i64} {
  func.func @_fused_cnn_kernel(%arg0: i32, %arg1: memref<1x16x32xf32, #tpu.memory_space<vmem>>, %arg2: memref<224x64xbf16, #tpu.memory_space<vmem>>, %arg3: memref<1x64xf32, #tpu.memory_space<vmem>>, %arg4: memref<1x64xf32, #tpu.memory_space<vmem>>, %arg5: memref<320x32xbf16, #tpu.memory_space<vmem>>, %arg6: memref<1x32xf32, #tpu.memory_space<vmem>>, %arg7: memref<1x32xf32, #tpu.memory_space<vmem>>, %arg8: memref<96x32xbf16, #tpu.memory_space<vmem>>, %arg9: memref<1x32xf32, #tpu.memory_space<vmem>>, %arg10: memref<1x32xf32, #tpu.memory_space<vmem>>, %arg11: memref<96x16xbf16, #tpu.memory_space<vmem>>, %arg12: memref<1x16xf32, #tpu.memory_space<vmem>>, %arg13: memref<1x16xf32, #tpu.memory_space<vmem>>, %arg14: memref<1x16x16xf32, #tpu.memory_space<vmem>>, %arg15: memref<22x64xf32, #tpu.memory_space<vmem>>, %arg16: memref<16x320xf32, #tpu.memory_space<vmem>>) attributes {dimension_semantics = [#tpu.dimension_semantics<parallel>], iteration_bounds = array<i64: 2>, scalar_prefetch = 0 : i64, scratch_operands = 2 : i64, tpu.core_type = #tpu.core_type<tc>, window_params = [{transform_indices = @transform_0, window_bounds = array<i64: 1, 16, 32>}, {pipeline_mode = #tpu.pipeline_mode<synchronous>, transform_indices = @transform_1, window_bounds = array<i64: 224, 64>}, {pipeline_mode = #tpu.pipeline_mode<synchronous>, transform_indices = @transform_2, window_bounds = array<i64: 1, 64>}, {pipeline_mode = #tpu.pipeline_mode<synchronous>, transform_indices = @transform_3, window_bounds = array<i64: 1, 64>}, {pipeline_mode = #tpu.pipeline_mode<synchronous>, transform_indices = @transform_4, window_bounds = array<i64: 320, 32>}, {pipeline_mode = #tpu.pipeline_mode<synchronous>, transform_indices = @transform_5, window_bounds = array<i64: 1, 32>}, {pipeline_mode = #tpu.pipeline_mode<synchronous>, transform_indices = @transform_6, window_bounds = array<i64: 1, 32>}, {pipeline_mode = #tpu.pipeline_mode<synchronous>, transform_indices = @transform_7, window_bounds = array<i64: 96, 32>}, {pipeline_mode = #tpu.pipeline_mode<synchronous>, transform_indices = @transform_8, window_bounds = array<i64: 1, 32>}, {pipeline_mode = #tpu.pipeline_mode<synchronous>, transform_indices = @transform_9, window_bounds = array<i64: 1, 32>}, {pipeline_mode = #tpu.pipeline_mode<synchronous>, transform_indices = @transform_10, window_bounds = array<i64: 96, 16>}, {pipeline_mode = #tpu.pipeline_mode<synchronous>, transform_indices = @transform_11, window_bounds = array<i64: 1, 16>}, {pipeline_mode = #tpu.pipeline_mode<synchronous>, transform_indices = @transform_12, window_bounds = array<i64: 1, 16>}, {transform_indices = @transform_13, window_bounds = array<i64: 1, 16, 16>}]} {
    %c0 = arith.constant 0 : index
    %c0_0 = arith.constant 0 : index
    %c0_1 = arith.constant 0 : index
    %0 = vector.load %arg1[%c0, %c0_0, %c0_1] : memref<1x16x32xf32, #tpu.memory_space<vmem>>, vector<1x16x32xf32>
    %1 = vector.shape_cast %0 : vector<1x16x32xf32> to vector<16x32xf32>
    %cst = arith.constant 0.000000e+00 : f32
    %2 = vector.broadcast %cst : f32 to vector<22x64xf32>
    %c0_2 = arith.constant 0 : index
    %c0_3 = arith.constant 0 : index
    %3 = vector.load %arg15[%c0_2, %c0_3] : memref<22x64xf32, #tpu.memory_space<vmem>>, vector<22x64xf32>
    tpu.vector_store %arg15[%c0_2, %c0_3], %2 {strides = array<i32>} : memref<22x64xf32, #tpu.memory_space<vmem>>, vector<22x64xf32>,
    %c3 = arith.constant 3 : index
    %c0_4 = arith.constant 0 : index
    %4 = vector.load %arg15[%c3, %c0_4] : memref<22x64xf32, #tpu.memory_space<vmem>>, vector<16x32xf32>
    tpu.vector_store %arg15[%c3, %c0_4], %1 {strides = array<i32>} : memref<22x64xf32, #tpu.memory_space<vmem>>, vector<16x32xf32>,
    %c0_5 = arith.constant 0 : index
    %c0_6 = arith.constant 0 : index
    %5 = vector.load %arg15[%c0_5, %c0_6] : memref<22x64xf32, #tpu.memory_space<vmem>>, vector<16x32xf32>
    %c0_7 = arith.constant 0 : index
    %c0_8 = arith.constant 0 : index
    %6 = vector.load %arg16[%c0_7, %c0_8] : memref<16x320xf32, #tpu.memory_space<vmem>>, vector<16x32xf32>
    tpu.vector_store %arg16[%c0_7, %c0_8], %5 {strides = array<i32>} : memref<16x320xf32, #tpu.memory_space<vmem>>, vector<16x32xf32>,
    %c1 = arith.constant 1 : index
    %c0_9 = arith.constant 0 : index
    %7 = vector.load %arg15[%c1, %c0_9] : memref<22x64xf32, #tpu.memory_space<vmem>>, vector<16x32xf32>
    %c0_10 = arith.constant 0 : index
    %c32 = arith.constant 32 : index
    %8 = vector.load %arg16[%c0_10, %c32] : memref<16x320xf32, #tpu.memory_space<vmem>>, vector<16x32xf32>
    tpu.vector_store %arg16[%c0_10, %c32], %7 {strides = array<i32>} : memref<16x320xf32, #tpu.memory_space<vmem>>, vector<16x32xf32>,
    %c2 = arith.constant 2 : index
    %c0_11 = arith.constant 0 : index
    %9 = vector.load %arg15[%c2, %c0_11] : memref<22x64xf32, #tpu.memory_space<vmem>>, vector<16x32xf32>
    %c0_12 = arith.constant 0 : index
    %c64 = arith.constant 64 : index
    %10 = vector.load %arg16[%c0_12, %c64] : memref<16x320xf32, #tpu.memory_space<vmem>>, vector<16x32xf32>
    tpu.vector_store %arg16[%c0_12, %c64], %9 {strides = array<i32>} : memref<16x320xf32, #tpu.memory_space<vmem>>, vector<16x32xf32>,
    %c3_13 = arith.constant 3 : index
    %c0_14 = arith.constant 0 : index
    %11 = vector.load %arg15[%c3_13, %c0_14] : memref<22x64xf32, #tpu.memory_space<vmem>>, vector<16x32xf32>
    %c0_15 = arith.constant 0 : index
    %c96 = arith.constant 96 : index
    %12 = vector.load %arg16[%c0_15, %c96] : memref<16x320xf32, #tpu.memory_space<vmem>>, vector<16x32xf32>
    tpu.vector_store %arg16[%c0_15, %c96], %11 {strides = array<i32>} : memref<16x320xf32, #tpu.memory_space<vmem>>, vector<16x32xf32>,
    %c4 = arith.constant 4 : index
    %c0_16 = arith.constant 0 : index
    %13 = vector.load %arg15[%c4, %c0_16] : memref<22x64xf32, #tpu.memory_space<vmem>>, vector<16x32xf32>
    %c0_17 = arith.constant 0 : index
    %c128 = arith.constant 128 : index
    %14 = vector.load %arg16[%c0_17, %c128] : memref<16x320xf32, #tpu.memory_space<vmem>>, vector<16x32xf32>
    tpu.vector_store %arg16[%c0_17, %c128], %13 {strides = array<i32>} : memref<16x320xf32, #tpu.memory_space<vmem>>, vector<16x32xf32>,
    %c5 = arith.constant 5 : index
    %c0_18 = arith.constant 0 : index
    %15 = vector.load %arg15[%c5, %c0_18] : memref<22x64xf32, #tpu.memory_space<vmem>>, vector<16x32xf32>
    %c0_19 = arith.constant 0 : index
    %c160 = arith.constant 160 : index
    %16 = vector.load %arg16[%c0_19, %c160] : memref<16x320xf32, #tpu.memory_space<vmem>>, vector<16x32xf32>
    tpu.vector_store %arg16[%c0_19, %c160], %15 {strides = array<i32>} : memref<16x320xf32, #tpu.memory_space<vmem>>, vector<16x32xf32>,
    %c6 = arith.constant 6 : index
    %c0_20 = arith.constant 0 : index
    %17 = vector.load %arg15[%c6, %c0_20] : memref<22x64xf32, #tpu.memory_space<vmem>>, vector<16x32xf32>
    %c0_21 = arith.constant 0 : index
    %c192 = arith.constant 192 : index
    %18 = vector.load %arg16[%c0_21, %c192] : memref<16x320xf32, #tpu.memory_space<vmem>>, vector<16x32xf32>
    tpu.vector_store %arg16[%c0_21, %c192], %17 {strides = array<i32>} : memref<16x320xf32, #tpu.memory_space<vmem>>, vector<16x32xf32>,
    %c0_22 = arith.constant 0 : index
    %c0_23 = arith.constant 0 : index
    %19 = vector.load %arg16[%c0_22, %c0_23] : memref<16x320xf32, #tpu.memory_space<vmem>>, vector<16x224xf32>
    %20 = arith.truncf %19 : vector<16x224xf32> to vector<16x224xbf16>
    %c0_24 = arith.constant 0 : index
    %c0_25 = arith.constant 0 : index
    %21 = vector.load %arg2[%c0_24, %c0_25] : memref<224x64xbf16, #tpu.memory_space<vmem>>, vector<224x64xbf16>
    %cst_26 = arith.constant dense<0.000000e+00> : vector<16x64xf32>
    %22 = tpu.matmul %20, %21, %cst_26 {dimension_numbers = #tpu.dot_dimension_numbers<[1], [0], [0], [1], [0, 0, 1, 1], [], []>} : vector<16x224xbf16>, vector<224x64xbf16>, vector<16x64xf32> -> vector<16x64xf32>
    %c0_27 = arith.constant 0 : index
    %c0_28 = arith.constant 0 : index
    %23 = vector.load %arg3[%c0_27, %c0_28] : memref<1x64xf32, #tpu.memory_space<vmem>>, vector<1x64xf32>
    %24 = vector.broadcast %23 : vector<1x64xf32> to vector<16x64xf32>
    %25 = arith.mulf %22, %24 : vector<16x64xf32>
    %c0_29 = arith.constant 0 : index
    %c0_30 = arith.constant 0 : index
    %26 = vector.load %arg4[%c0_29, %c0_30] : memref<1x64xf32, #tpu.memory_space<vmem>>, vector<1x64xf32>
    %27 = vector.broadcast %26 : vector<1x64xf32> to vector<16x64xf32>
    %28 = arith.addf %25, %27 : vector<16x64xf32>
    %cst_31 = arith.constant 0.000000e+00 : f32
    %29 = vector.broadcast %cst_31 : f32 to vector<16x64xf32>
    %30 = arith.cmpf oge, %28, %29 : vector<16x64xf32>
    %cst_32 = arith.constant 3.000000e-01 : f32
    %31 = vector.broadcast %cst_32 : f32 to vector<16x64xf32>
    %32 = arith.mulf %31, %28 : vector<16x64xf32>
    %33 = arith.select %30, %28, %32 : vector<16x64xi1>, vector<16x64xf32>
    %cst_33 = arith.constant 0.000000e+00 : f32
    %34 = vector.broadcast %cst_33 : f32 to vector<22x64xf32>
    %c0_34 = arith.constant 0 : index
    %c0_35 = arith.constant 0 : index
    %35 = vector.load %arg15[%c0_34, %c0_35] : memref<22x64xf32, #tpu.memory_space<vmem>>, vector<22x64xf32>
    tpu.vector_store %arg15[%c0_34, %c0_35], %34 {strides = array<i32>} : memref<22x64xf32, #tpu.memory_space<vmem>>, vector<22x64xf32>,
    %c2_36 = arith.constant 2 : index
    %c0_37 = arith.constant 0 : index
    %36 = vector.load %arg15[%c2_36, %c0_37] : memref<22x64xf32, #tpu.memory_space<vmem>>, vector<16x64xf32>
    tpu.vector_store %arg15[%c2_36, %c0_37], %33 {strides = array<i32>} : memref<22x64xf32, #tpu.memory_space<vmem>>, vector<16x64xf32>,
    %c0_38 = arith.constant 0 : index
    %c0_39 = arith.constant 0 : index
    %37 = vector.load %arg15[%c0_38, %c0_39] : memref<22x64xf32, #tpu.memory_space<vmem>>, vector<16x64xf32>
    %c0_40 = arith.constant 0 : index
    %c0_41 = arith.constant 0 : index
    %38 = vector.load %arg16[%c0_40, %c0_41] : memref<16x320xf32, #tpu.memory_space<vmem>>, vector<16x64xf32>
    tpu.vector_store %arg16[%c0_40, %c0_41], %37 {strides = array<i32>} : memref<16x320xf32, #tpu.memory_space<vmem>>, vector<16x64xf32>,
    %c1_42 = arith.constant 1 : index
    %c0_43 = arith.constant 0 : index
    %39 = vector.load %arg15[%c1_42, %c0_43] : memref<22x64xf32, #tpu.memory_space<vmem>>, vector<16x64xf32>
    %c0_44 = arith.constant 0 : index
    %c64_45 = arith.constant 64 : index
    %40 = vector.load %arg16[%c0_44, %c64_45] : memref<16x320xf32, #tpu.memory_space<vmem>>, vector<16x64xf32>
    tpu.vector_store %arg16[%c0_44, %c64_45], %39 {strides = array<i32>} : memref<16x320xf32, #tpu.memory_space<vmem>>, vector<16x64xf32>,
    %c2_46 = arith.constant 2 : index
    %c0_47 = arith.constant 0 : index
    %41 = vector.load %arg15[%c2_46, %c0_47] : memref<22x64xf32, #tpu.memory_space<vmem>>, vector<16x64xf32>
    %c0_48 = arith.constant 0 : index
    %c128_49 = arith.constant 128 : index
    %42 = vector.load %arg16[%c0_48, %c128_49] : memref<16x320xf32, #tpu.memory_space<vmem>>, vector<16x64xf32>
    tpu.vector_store %arg16[%c0_48, %c128_49], %41 {strides = array<i32>} : memref<16x320xf32, #tpu.memory_space<vmem>>, vector<16x64xf32>,
    %c3_50 = arith.constant 3 : index
    %c0_51 = arith.constant 0 : index
    %43 = vector.load %arg15[%c3_50, %c0_51] : memref<22x64xf32, #tpu.memory_space<vmem>>, vector<16x64xf32>
    %c0_52 = arith.constant 0 : index
    %c192_53 = arith.constant 192 : index
    %44 = vector.load %arg16[%c0_52, %c192_53] : memref<16x320xf32, #tpu.memory_space<vmem>>, vector<16x64xf32>
    tpu.vector_store %arg16[%c0_52, %c192_53], %43 {strides = array<i32>} : memref<16x320xf32, #tpu.memory_space<vmem>>, vector<16x64xf32>,
    %c4_54 = arith.constant 4 : index
    %c0_55 = arith.constant 0 : index
    %45 = vector.load %arg15[%c4_54, %c0_55] : memref<22x64xf32, #tpu.memory_space<vmem>>, vector<16x64xf32>
    %c0_56 = arith.constant 0 : index
    %c256 = arith.constant 256 : index
    %46 = vector.load %arg16[%c0_56, %c256] : memref<16x320xf32, #tpu.memory_space<vmem>>, vector<16x64xf32>
    tpu.vector_store %arg16[%c0_56, %c256], %45 {strides = array<i32>} : memref<16x320xf32, #tpu.memory_space<vmem>>, vector<16x64xf32>,
    %c0_57 = arith.constant 0 : index
    %c0_58 = arith.constant 0 : index
    %47 = vector.load %arg16[%c0_57, %c0_58] : memref<16x320xf32, #tpu.memory_space<vmem>>, vector<16x320xf32>
    %48 = arith.truncf %47 : vector<16x320xf32> to vector<16x320xbf16>
    %c0_59 = arith.constant 0 : index
    %c0_60 = arith.constant 0 : index
    %49 = vector.load %arg5[%c0_59, %c0_60] : memref<320x32xbf16, #tpu.memory_space<vmem>>, vector<320x32xbf16>
    %cst_61 = arith.constant dense<0.000000e+00> : vector<16x32xf32>
    %50 = tpu.matmul %48, %49, %cst_61 {dimension_numbers = #tpu.dot_dimension_numbers<[1], [0], [0], [1], [0, 0, 1, 1], [], []>} : vector<16x320xbf16>, vector<320x32xbf16>, vector<16x32xf32> -> vector<16x32xf32>
    %c0_62 = arith.constant 0 : index
    %c0_63 = arith.constant 0 : index
    %51 = vector.load %arg6[%c0_62, %c0_63] : memref<1x32xf32, #tpu.memory_space<vmem>>, vector<1x32xf32>
    %52 = vector.broadcast %51 : vector<1x32xf32> to vector<16x32xf32>
    %53 = arith.mulf %50, %52 : vector<16x32xf32>
    %c0_64 = arith.constant 0 : index
    %c0_65 = arith.constant 0 : index
    %54 = vector.load %arg7[%c0_64, %c0_65] : memref<1x32xf32, #tpu.memory_space<vmem>>, vector<1x32xf32>
    %55 = vector.broadcast %54 : vector<1x32xf32> to vector<16x32xf32>
    %56 = arith.addf %53, %55 : vector<16x32xf32>
    %cst_66 = arith.constant 0.000000e+00 : f32
    %57 = vector.broadcast %cst_66 : f32 to vector<16x32xf32>
    %58 = arith.cmpf oge, %56, %57 : vector<16x32xf32>
    %cst_67 = arith.constant 3.000000e-01 : f32
    %59 = vector.broadcast %cst_67 : f32 to vector<16x32xf32>
    %60 = arith.mulf %59, %56 : vector<16x32xf32>
    %61 = arith.select %58, %56, %60 : vector<16x32xi1>, vector<16x32xf32>
    %cst_68 = arith.constant 0.000000e+00 : f32
    %62 = vector.broadcast %cst_68 : f32 to vector<22x64xf32>
    %c0_69 = arith.constant 0 : index
    %c0_70 = arith.constant 0 : index
    %63 = vector.load %arg15[%c0_69, %c0_70] : memref<22x64xf32, #tpu.memory_space<vmem>>, vector<22x64xf32>
    tpu.vector_store %arg15[%c0_69, %c0_70], %62 {strides = array<i32>} : memref<22x64xf32, #tpu.memory_space<vmem>>, vector<22x64xf32>,
    %c1_71 = arith.constant 1 : index
    %c0_72 = arith.constant 0 : index
    %64 = vector.load %arg15[%c1_71, %c0_72] : memref<22x64xf32, #tpu.memory_space<vmem>>, vector<16x32xf32>
    tpu.vector_store %arg15[%c1_71, %c0_72], %61 {strides = array<i32>} : memref<22x64xf32, #tpu.memory_space<vmem>>, vector<16x32xf32>,
    %c0_73 = arith.constant 0 : index
    %c0_74 = arith.constant 0 : index
    %65 = vector.load %arg15[%c0_73, %c0_74] : memref<22x64xf32, #tpu.memory_space<vmem>>, vector<16x32xf32>
    %c0_75 = arith.constant 0 : index
    %c0_76 = arith.constant 0 : index
    %66 = vector.load %arg16[%c0_75, %c0_76] : memref<16x320xf32, #tpu.memory_space<vmem>>, vector<16x32xf32>
    tpu.vector_store %arg16[%c0_75, %c0_76], %65 {strides = array<i32>} : memref<16x320xf32, #tpu.memory_space<vmem>>, vector<16x32xf32>,
    %c1_77 = arith.constant 1 : index
    %c0_78 = arith.constant 0 : index
    %67 = vector.load %arg15[%c1_77, %c0_78] : memref<22x64xf32, #tpu.memory_space<vmem>>, vector<16x32xf32>
    %c0_79 = arith.constant 0 : index
    %c32_80 = arith.constant 32 : index
    %68 = vector.load %arg16[%c0_79, %c32_80] : memref<16x320xf32, #tpu.memory_space<vmem>>, vector<16x32xf32>
    tpu.vector_store %arg16[%c0_79, %c32_80], %67 {strides = array<i32>} : memref<16x320xf32, #tpu.memory_space<vmem>>, vector<16x32xf32>,
    %c2_81 = arith.constant 2 : index
    %c0_82 = arith.constant 0 : index
    %69 = vector.load %arg15[%c2_81, %c0_82] : memref<22x64xf32, #tpu.memory_space<vmem>>, vector<16x32xf32>
    %c0_83 = arith.constant 0 : index
    %c64_84 = arith.constant 64 : index
    %70 = vector.load %arg16[%c0_83, %c64_84] : memref<16x320xf32, #tpu.memory_space<vmem>>, vector<16x32xf32>
    tpu.vector_store %arg16[%c0_83, %c64_84], %69 {strides = array<i32>} : memref<16x320xf32, #tpu.memory_space<vmem>>, vector<16x32xf32>,
    %c0_85 = arith.constant 0 : index
    %c0_86 = arith.constant 0 : index
    %71 = vector.load %arg16[%c0_85, %c0_86] : memref<16x320xf32, #tpu.memory_space<vmem>>, vector<16x96xf32>
    %72 = arith.truncf %71 : vector<16x96xf32> to vector<16x96xbf16>
    %c0_87 = arith.constant 0 : index
    %c0_88 = arith.constant 0 : index
    %73 = vector.load %arg8[%c0_87, %c0_88] : memref<96x32xbf16, #tpu.memory_space<vmem>>, vector<96x32xbf16>
    %cst_89 = arith.constant dense<0.000000e+00> : vector<16x32xf32>
    %74 = tpu.matmul %72, %73, %cst_89 {dimension_numbers = #tpu.dot_dimension_numbers<[1], [0], [0], [1], [0, 0, 1, 1], [], []>} : vector<16x96xbf16>, vector<96x32xbf16>, vector<16x32xf32> -> vector<16x32xf32>
    %c0_90 = arith.constant 0 : index
    %c0_91 = arith.constant 0 : index
    %75 = vector.load %arg9[%c0_90, %c0_91] : memref<1x32xf32, #tpu.memory_space<vmem>>, vector<1x32xf32>
    %76 = vector.broadcast %75 : vector<1x32xf32> to vector<16x32xf32>
    %77 = arith.mulf %74, %76 : vector<16x32xf32>
    %c0_92 = arith.constant 0 : index
    %c0_93 = arith.constant 0 : index
    %78 = vector.load %arg10[%c0_92, %c0_93] : memref<1x32xf32, #tpu.memory_space<vmem>>, vector<1x32xf32>
    %79 = vector.broadcast %78 : vector<1x32xf32> to vector<16x32xf32>
    %80 = arith.addf %77, %79 : vector<16x32xf32>
    %cst_94 = arith.constant 0.000000e+00 : f32
    %81 = vector.broadcast %cst_94 : f32 to vector<16x32xf32>
    %82 = arith.cmpf oge, %80, %81 : vector<16x32xf32>
    %cst_95 = arith.constant 3.000000e-01 : f32
    %83 = vector.broadcast %cst_95 : f32 to vector<16x32xf32>
    %84 = arith.mulf %83, %80 : vector<16x32xf32>
    %85 = arith.select %82, %80, %84 : vector<16x32xi1>, vector<16x32xf32>
    %cst_96 = arith.constant 0.000000e+00 : f32
    %86 = vector.broadcast %cst_96 : f32 to vector<22x64xf32>
    %c0_97 = arith.constant 0 : index
    %c0_98 = arith.constant 0 : index
    %87 = vector.load %arg15[%c0_97, %c0_98] : memref<22x64xf32, #tpu.memory_space<vmem>>, vector<22x64xf32>
    tpu.vector_store %arg15[%c0_97, %c0_98], %86 {strides = array<i32>} : memref<22x64xf32, #tpu.memory_space<vmem>>, vector<22x64xf32>,
    %c1_99 = arith.constant 1 : index
    %c0_100 = arith.constant 0 : index
    %88 = vector.load %arg15[%c1_99, %c0_100] : memref<22x64xf32, #tpu.memory_space<vmem>>, vector<16x32xf32>
    tpu.vector_store %arg15[%c1_99, %c0_100], %85 {strides = array<i32>} : memref<22x64xf32, #tpu.memory_space<vmem>>, vector<16x32xf32>,
    %c0_101 = arith.constant 0 : index
    %c0_102 = arith.constant 0 : index
    %89 = vector.load %arg15[%c0_101, %c0_102] : memref<22x64xf32, #tpu.memory_space<vmem>>, vector<16x32xf32>
    %c0_103 = arith.constant 0 : index
    %c0_104 = arith.constant 0 : index
    %90 = vector.load %arg16[%c0_103, %c0_104] : memref<16x320xf32, #tpu.memory_space<vmem>>, vector<16x32xf32>
    tpu.vector_store %arg16[%c0_103, %c0_104], %89 {strides = array<i32>} : memref<16x320xf32, #tpu.memory_space<vmem>>, vector<16x32xf32>,
    %c1_105 = arith.constant 1 : index
    %c0_106 = arith.constant 0 : index
    %91 = vector.load %arg15[%c1_105, %c0_106] : memref<22x64xf32, #tpu.memory_space<vmem>>, vector<16x32xf32>
    %c0_107 = arith.constant 0 : index
    %c32_108 = arith.constant 32 : index
    %92 = vector.load %arg16[%c0_107, %c32_108] : memref<16x320xf32, #tpu.memory_space<vmem>>, vector<16x32xf32>
    tpu.vector_store %arg16[%c0_107, %c32_108], %91 {strides = array<i32>} : memref<16x320xf32, #tpu.memory_space<vmem>>, vector<16x32xf32>,
    %c2_109 = arith.constant 2 : index
    %c0_110 = arith.constant 0 : index
    %93 = vector.load %arg15[%c2_109, %c0_110] : memref<22x64xf32, #tpu.memory_space<vmem>>, vector<16x32xf32>
    %c0_111 = arith.constant 0 : index
    %c64_112 = arith.constant 64 : index
    %94 = vector.load %arg16[%c0_111, %c64_112] : memref<16x320xf32, #tpu.memory_space<vmem>>, vector<16x32xf32>
    tpu.vector_store %arg16[%c0_111, %c64_112], %93 {strides = array<i32>} : memref<16x320xf32, #tpu.memory_space<vmem>>, vector<16x32xf32>,
    %c0_113 = arith.constant 0 : index
    %c0_114 = arith.constant 0 : index
    %95 = vector.load %arg16[%c0_113, %c0_114] : memref<16x320xf32, #tpu.memory_space<vmem>>, vector<16x96xf32>
    %96 = arith.truncf %95 : vector<16x96xf32> to vector<16x96xbf16>
    %c0_115 = arith.constant 0 : index
    %c0_116 = arith.constant 0 : index
    %97 = vector.load %arg11[%c0_115, %c0_116] : memref<96x16xbf16, #tpu.memory_space<vmem>>, vector<96x16xbf16>
    %cst_117 = arith.constant dense<0.000000e+00> : vector<16x16xf32>
    %98 = tpu.matmul %96, %97, %cst_117 {dimension_numbers = #tpu.dot_dimension_numbers<[1], [0], [0], [1], [0, 0, 1, 1], [], []>} : vector<16x96xbf16>, vector<96x16xbf16>, vector<16x16xf32> -> vector<16x16xf32>
    %c0_118 = arith.constant 0 : index
    %c0_119 = arith.constant 0 : index
    %99 = vector.load %arg12[%c0_118, %c0_119] : memref<1x16xf32, #tpu.memory_space<vmem>>, vector<1x16xf32>
    %100 = vector.broadcast %99 : vector<1x16xf32> to vector<16x16xf32>
    %101 = arith.mulf %98, %100 : vector<16x16xf32>
    %c0_120 = arith.constant 0 : index
    %c0_121 = arith.constant 0 : index
    %102 = vector.load %arg13[%c0_120, %c0_121] : memref<1x16xf32, #tpu.memory_space<vmem>>, vector<1x16xf32>
    %103 = vector.broadcast %102 : vector<1x16xf32> to vector<16x16xf32>
    %104 = arith.addf %101, %103 : vector<16x16xf32>
    %c0_122 = arith.constant 0 : index
    %c0_123 = arith.constant 0 : index
    %c0_124 = arith.constant 0 : index
    %105 = vector.load %arg14[%c0_122, %c0_123, %c0_124] : memref<1x16x16xf32, #tpu.memory_space<vmem>>, vector<1x16x16xf32>
    %106 = vector.shape_cast %105 : vector<1x16x16xf32> to vector<16x16xf32>
    %107 = vector.shape_cast %104 : vector<16x16xf32> to vector<1x16x16xf32>
    tpu.vector_store %arg14[%c0_122, %c0_123, %c0_124], %107 {strides = array<i32>} : memref<1x16x16xf32, #tpu.memory_space<vmem>>, vector<1x16x16xf32>,
    return
  }
  func.func @transform_0(%arg0: i32) -> (i32, i32, i32) {
    %c0_i32 = arith.constant 0 : i32
    %c0_i32_0 = arith.constant 0 : i32
    %c0_i32_1 = arith.constant 0 : i32
    return %arg0, %c0_i32, %c0_i32_0 : i32, i32, i32
  }
  func.func @transform_1(%arg0: i32) -> (i32, i32) {
    %c0_i32 = arith.constant 0 : i32
    %c0_i32_0 = arith.constant 0 : i32
    %c0_i32_1 = arith.constant 0 : i32
    return %c0_i32, %c0_i32_0 : i32, i32
  }
  func.func @transform_2(%arg0: i32) -> (i32, i32) {
    %c0_i32 = arith.constant 0 : i32
    %c0_i32_0 = arith.constant 0 : i32
    %c0_i32_1 = arith.constant 0 : i32
    return %c0_i32, %c0_i32_0 : i32, i32
  }
  func.func @transform_3(%arg0: i32) -> (i32, i32) {
    %c0_i32 = arith.constant 0 : i32
    %c0_i32_0 = arith.constant 0 : i32
    %c0_i32_1 = arith.constant 0 : i32
    return %c0_i32, %c0_i32_0 : i32, i32
  }
  func.func @transform_4(%arg0: i32) -> (i32, i32) {
    %c0_i32 = arith.constant 0 : i32
    %c0_i32_0 = arith.constant 0 : i32
    %c0_i32_1 = arith.constant 0 : i32
    return %c0_i32, %c0_i32_0 : i32, i32
  }
  func.func @transform_5(%arg0: i32) -> (i32, i32) {
    %c0_i32 = arith.constant 0 : i32
    %c0_i32_0 = arith.constant 0 : i32
    %c0_i32_1 = arith.constant 0 : i32
    return %c0_i32, %c0_i32_0 : i32, i32
  }
  func.func @transform_6(%arg0: i32) -> (i32, i32) {
    %c0_i32 = arith.constant 0 : i32
    %c0_i32_0 = arith.constant 0 : i32
    %c0_i32_1 = arith.constant 0 : i32
    return %c0_i32, %c0_i32_0 : i32, i32
  }
  func.func @transform_7(%arg0: i32) -> (i32, i32) {
    %c0_i32 = arith.constant 0 : i32
    %c0_i32_0 = arith.constant 0 : i32
    %c0_i32_1 = arith.constant 0 : i32
    return %c0_i32, %c0_i32_0 : i32, i32
  }
  func.func @transform_8(%arg0: i32) -> (i32, i32) {
    %c0_i32 = arith.constant 0 : i32
    %c0_i32_0 = arith.constant 0 : i32
    %c0_i32_1 = arith.constant 0 : i32
    return %c0_i32, %c0_i32_0 : i32, i32
  }
  func.func @transform_9(%arg0: i32) -> (i32, i32) {
    %c0_i32 = arith.constant 0 : i32
    %c0_i32_0 = arith.constant 0 : i32
    %c0_i32_1 = arith.constant 0 : i32
    return %c0_i32, %c0_i32_0 : i32, i32
  }
  func.func @transform_10(%arg0: i32) -> (i32, i32) {
    %c0_i32 = arith.constant 0 : i32
    %c0_i32_0 = arith.constant 0 : i32
    %c0_i32_1 = arith.constant 0 : i32
    return %c0_i32, %c0_i32_0 : i32, i32
  }
  func.func @transform_11(%arg0: i32) -> (i32, i32) {
    %c0_i32 = arith.constant 0 : i32
    %c0_i32_0 = arith.constant 0 : i32
    %c0_i32_1 = arith.constant 0 : i32
    return %c0_i32, %c0_i32_0 : i32, i32
  }
  func.func @transform_12(%arg0: i32) -> (i32, i32) {
    %c0_i32 = arith.constant 0 : i32
    %c0_i32_0 = arith.constant 0 : i32
    %c0_i32_1 = arith.constant 0 : i32
    return %c0_i32, %c0_i32_0 : i32, i32
  }
  func.func @transform_13(%arg0: i32) -> (i32, i32, i32) {
    %c0_i32 = arith.constant 0 : i32
    %c0_i32_0 = arith.constant 0 : i32
    %c0_i32_1 = arith.constant 0 : i32
    return %arg0, %c0_i32, %c0_i32_0 : i32, i32, i32
  }
}

</mosaic_0001>

<llo_original>
// kernel: beamform_net_forward.1
$region0: #{beamform_net_forward.1}
  #allocation0 [shape = 'u32[]', space=smem, size = 0x4, offset = 0x4, fixed_abs, tag = 'smem constant byte address 0x4 - core index']
  #allocation1 [shape = 'u32[144,128]{1,0:T(1,128)}', space=vmem, size = 0x12000, scoped, tag = 'internal scratch']
  #allocation2 [shape = 'f32[22,64]{1,0:T(8,128)}', space=vmem, size = 0x3000, scoped, tag = 'scratch operand']
  #allocation3 [shape = 'f32[16,320]{1,0:T(8,128)}', space=vmem, size = 0x6000, scoped, tag = 'scratch operand']
  %s0 = inlined_call_operand.vmem [shape: f32[2,16,32], index: 0, kind: input, shape index: {}]
  %s1 = inlined_call_operand.vmem [shape: bf16[224,64], index: 1, kind: input, shape index: {}]
  %s2 = inlined_call_operand.vmem [shape: f32[1,64], index: 2, kind: input, shape index: {}]
  %s3 = inlined_call_operand.vmem [shape: f32[1,64], index: 3, kind: input, shape index: {}]
  %s4 = inlined_call_operand.vmem [shape: bf16[320,32], index: 4, kind: input, shape index: {}]
  %s5 = inlined_call_operand.vmem [shape: f32[1,32], index: 5, kind: input, shape index: {}]
  %s6 = inlined_call_operand.vmem [shape: f32[1,32], index: 6, kind: input, shape index: {}]
  %s7 = inlined_call_operand.vmem [shape: bf16[96,32], index: 7, kind: input, shape index: {}]
  %s8 = inlined_call_operand.vmem [shape: f32[1,32], index: 8, kind: input, shape index: {}]
  %s9 = inlined_call_operand.vmem [shape: f32[1,32], index: 9, kind: input, shape index: {}]
  %s10 = inlined_call_operand.vmem [shape: bf16[96,16], index: 10, kind: input, shape index: {}]
  %s11 = inlined_call_operand.vmem [shape: f32[1,16], index: 11, kind: input, shape index: {}]
  %s12 = inlined_call_operand.vmem [shape: f32[1,16], index: 12, kind: input, shape index: {}]
  %s13 = inlined_call_operand.vmem [shape: f32[2,16,16], index: 13, kind: output, shape index: {}]
  %s14 = sld [smem:[#allocation0]]
  $region85: #{beamform_net_forward.1} parent=0
    _
  %s16 = ssub.s32 1, %s14
  %s17 = scalar_select 0, %s16, %s14
  loop: start=0, step=1, limit=4
  $region2: #{beamform_net_forward.1} parent=0 // loop_pre_header
    _
  $region3: #{beamform_net_forward.1} parent=0 // loop_header
    %s19 = sphi 0, %s23
    %p20 = scmp.ge.s32.totalorder %s19, 4
    %s29 = sphi 0, %s31
    %s32 = sphi 0, %s29
    %s33 = sphi 0, %s32
    %s49 = sphi 0, %s33
    %s53 = sphi 0, %s53
    %s55 = sphi 0, %s53
    %s56 = sphi 0, %s55
    %s70 = sphi 0, %s56
    %s74 = sphi 0, %s74
    %s76 = sphi 0, %s74
    %s77 = sphi 0, %s76
    %s91 = sphi 0, %s77
    %s95 = sphi 0, %s95
    %s97 = sphi 0, %s95
    %s98 = sphi 0, %s97
    %s112 = sphi 0, %s98
    %s116 = sphi 0, %s116
    %s118 = sphi 0, %s116
    %s119 = sphi 0, %s118
    %s133 = sphi 0, %s119
    %s137 = sphi 0, %s137
    %s139 = sphi 0, %s137
    %s140 = sphi 0, %s139
    %s154 = sphi 0, %s140
    %s158 = sphi 0, %s158
    %s160 = sphi 0, %s158
    %s161 = sphi 0, %s160
    %s175 = sphi 0, %s161
    %s179 = sphi 0, %s179
    %s181 = sphi 0, %s179
    %s182 = sphi 0, %s181
    %s196 = sphi 0, %s182
    %s200 = sphi 0, %s200
    %s202 = sphi 0, %s200
    %s203 = sphi 0, %s202
    %s217 = sphi 0, %s203
    %s221 = sphi 0, %s221
    %s223 = sphi 0, %s221
    %s224 = sphi 0, %s223
    %s238 = sphi 0, %s224
    %s242 = sphi 0, %s242
    %s244 = sphi 0, %s242
    %s245 = sphi 0, %s244
    %s259 = sphi 0, %s245
    %s263 = sphi 0, %s263
    %s265 = sphi 0, %s263
    %s266 = sphi 0, %s265
    %s280 = sphi 0, %s266
    %s284 = sphi 0, %s284
    %s286 = sphi 0, %s284
    %s287 = sphi 0, %s286
    %s301 = sphi 0, %s287
    %s307 = sphi 0, %s309
    %s310 = sphi 0, %s307
    %s311 = sphi 0, %s310
    %s327 = sphi 0, %s311
  $region4: #{beamform_net_forward.1} parent=0 // loop_header_branch
    %22 = sbr.rel (%p20) target = $region8
  $region5: #{beamform_net_forward.1} parent=0 // loop_body
    %s24 = ssub.s32 %s19, 1
    %s25 = ssub.s32 %s19, 2
    %s26 = sadd.s32 %s19, 1
    %s27 = ssub.s32 %s19, %s26
    %p28 = scmp.eq.s32.totalorder %s27, 0
    %s30 = sadd.s32 %s29, 1
    %s31 = scalar_select %p28, %s29, %s30
    %p34 = pneg %p28
    %p35 = scmp.eq.s32.totalorder %s19, 1
    %p36 = por %p34, %p35
    %p37 = scmp.ne.s32.totalorder %s29, %s32
    %p38 = scmp.eq.s32.totalorder %s19, 0
    %p39 = por %p37, %p38
    %p40 = scmp.ne.s32.totalorder %s29, %s32
    %p41 = scmp.eq.s32.totalorder %s24, 1
    %p42 = por %p40, %p41
    %p43 = scmp.ne.s32.totalorder %s32, %s33
    %p44 = scmp.eq.s32.totalorder %s24, 0
    %p45 = por %p43, %p44
    %p46 = scmp.ne.s32.totalorder %s32, %s33
    %p47 = scmp.eq.s32.totalorder %s25, 1
    %p48 = por %p46, %p47
    %p50 = scmp.ne.s32.totalorder %s33, %s49
    %p51 = scmp.eq.s32.totalorder %s25, 0
    %p52 = por %p50, %p51
    %s54 = sadd.s32 %s53, 1
    %p57 = scmp.eq.s32.totalorder %s19, 1
    %p58 = scmp.ne.s32.totalorder %s53, %s55
    %p59 = scmp.eq.s32.totalorder %s19, 0
    %p60 = por %p58, %p59
    %p61 = scmp.ne.s32.totalorder %s53, %s55
    %p62 = scmp.eq.s32.totalorder %s24, 1
    %p63 = por %p61, %p62
    %p64 = scmp.ne.s32.totalorder %s55, %s56
    %p65 = scmp.eq.s32.totalorder %s24, 0
    %p66 = por %p64, %p65
    %p67 = scmp.ne.s32.totalorder %s55, %s56
    %p68 = scmp.eq.s32.totalorder %s25, 1
    %p69 = por %p67, %p68
    %p71 = scmp.ne.s32.totalorder %s56, %s70
    %p72 = scmp.eq.s32.totalorder %s25, 0
    %p73 = por %p71, %p72
    %s75 = sadd.s32 %s74, 1
    %p78 = scmp.eq.s32.totalorder %s19, 1
    %p79 = scmp.ne.s32.totalorder %s74, %s76
    %p80 = scmp.eq.s32.totalorder %s19, 0
    %p81 = por %p79, %p80
    %p82 = scmp.ne.s32.totalorder %s74, %s76
    %p83 = scmp.eq.s32.totalorder %s24, 1
    %p84 = por %p82, %p83
    %p85 = scmp.ne.s32.totalorder %s76, %s77
    %p86 = scmp.eq.s32.totalorder %s24, 0
    %p87 = por %p85, %p86
    %p88 = scmp.ne.s32.totalorder %s76, %s77
    %p89 = scmp.eq.s32.totalorder %s25, 1
    %p90 = por %p88, %p89
    %p92 = scmp.ne.s32.totalorder %s77, %s91
    %p93 = scmp.eq.s32.totalorder %s25, 0
    %p94 = por %p92, %p93
    %s96 = sadd.s32 %s95, 1
    %p99 = scmp.eq.s32.totalorder %s19, 1
    %p100 = scmp.ne.s32.totalorder %s95, %s97
    %p101 = scmp.eq.s32.totalorder %s19, 0
    %p102 = por %p100, %p101
    %p103 = scmp.ne.s32.totalorder %s95, %s97
    %p104 = scmp.eq.s32.totalorder %s24, 1
    %p105 = por %p103, %p104
    %p106 = scmp.ne.s32.totalorder %s97, %s98
    %p107 = scmp.eq.s32.totalorder %s24, 0
    %p108 = por %p106, %p107
    %p109 = scmp.ne.s32.totalorder %s97, %s98
    %p110 = scmp.eq.s32.totalorder %s25, 1
    %p111 = por %p109, %p110
    %p113 = scmp.ne.s32.totalorder %s98, %s112
    %p114 = scmp.eq.s32.totalorder %s25, 0
    %p115 = por %p113, %p114
    %s117 = sadd.s32 %s116, 1
    %p120 = scmp.eq.s32.totalorder %s19, 1
    %p121 = scmp.ne.s32.totalorder %s116, %s118
    %p122 = scmp.eq.s32.totalorder %s19, 0
    %p123 = por %p121, %p122
    %p124 = scmp.ne.s32.totalorder %s116, %s118
    %p125 = scmp.eq.s32.totalorder %s24, 1
    %p126 = por %p124, %p125
    %p127 = scmp.ne.s32.totalorder %s118, %s119
    %p128 = scmp.eq.s32.totalorder %s24, 0
    %p129 = por %p127, %p128
    %p130 = scmp.ne.s32.totalorder %s118, %s119
    %p131 = scmp.eq.s32.totalorder %s25, 1
    %p132 = por %p130, %p131
    %p134 = scmp.ne.s32.totalorder %s119, %s133
    %p135 = scmp.eq.s32.totalorder %s25, 0
    %p136 = por %p134, %p135
    %s138 = sadd.s32 %s137, 1
    %p141 = scmp.eq.s32.totalorder %s19, 1
    %p142 = scmp.ne.s32.totalorder %s137, %s139
    %p143 = scmp.eq.s32.totalorder %s19, 0
    %p144 = por %p142, %p143
    %p145 = scmp.ne.s32.totalorder %s137, %s139
    %p146 = scmp.eq.s32.totalorder %s24, 1
    %p147 = por %p145, %p146
    %p148 = scmp.ne.s32.totalorder %s139, %s140
    %p149 = scmp.eq.s32.totalorder %s24, 0
    %p150 = por %p148, %p149
    %p151 = scmp.ne.s32.totalorder %s139, %s140
    %p152 = scmp.eq.s32.totalorder %s25, 1
    %p153 = por %p151, %p152
    %p155 = scmp.ne.s32.totalorder %s140, %s154
    %p156 = scmp.eq.s32.totalorder %s25, 0
    %p157 = por %p155, %p156
    %s159 = sadd.s32 %s158, 1
    %p162 = scmp.eq.s32.totalorder %s19, 1
    %p163 = scmp.ne.s32.totalorder %s158, %s160
    %p164 = scmp.eq.s32.totalorder %s19, 0
    %p165 = por %p163, %p164
    %p166 = scmp.ne.s32.totalorder %s158, %s160
    %p167 = scmp.eq.s32.totalorder %s24, 1
    %p168 = por %p166, %p167
    %p169 = scmp.ne.s32.totalorder %s160, %s161
    %p170 = scmp.eq.s32.totalorder %s24, 0
    %p171 = por %p169, %p170
    %p172 = scmp.ne.s32.totalorder %s160, %s161
    %p173 = scmp.eq.s32.totalorder %s25, 1
    %p174 = por %p172, %p173
    %p176 = scmp.ne.s32.totalorder %s161, %s175
    %p177 = scmp.eq.s32.totalorder %s25, 0
    %p178 = por %p176, %p177
    %s180 = sadd.s32 %s179, 1
    %p183 = scmp.eq.s32.totalorder %s19, 1
    %p184 = scmp.ne.s32.totalorder %s179, %s181
    %p185 = scmp.eq.s32.totalorder %s19, 0
    %p186 = por %p184, %p185
    %p187 = scmp.ne.s32.totalorder %s179, %s181
    %p188 = scmp.eq.s32.totalorder %s24, 1
    %p189 = por %p187, %p188
    %p190 = scmp.ne.s32.totalorder %s181, %s182
    %p191 = scmp.eq.s32.totalorder %s24, 0
    %p192 = por %p190, %p191
    %p193 = scmp.ne.s32.totalorder %s181, %s182
    %p194 = scmp.eq.s32.totalorder %s25, 1
    %p195 = por %p193, %p194
    %p197 = scmp.ne.s32.totalorder %s182, %s196
    %p198 = scmp.eq.s32.totalorder %s25, 0
    %p199 = por %p197, %p198
    %s201 = sadd.s32 %s200, 1
    %p204 = scmp.eq.s32.totalorder %s19, 1
    %p205 = scmp.ne.s32.totalorder %s200, %s202
    %p206 = scmp.eq.s32.totalorder %s19, 0
    %p207 = por %p205, %p206
    %p208 = scmp.ne.s32.totalorder %s200, %s202
    %p209 = scmp.eq.s32.totalorder %s24, 1
    %p210 = por %p208, %p209
    %p211 = scmp.ne.s32.totalorder %s202, %s203
    %p212 = scmp.eq.s32.totalorder %s24, 0
    %p213 = por %p211, %p212
    %p214 = scmp.ne.s32.totalorder %s202, %s203
    %p215 = scmp.eq.s32.totalorder %s25, 1
    %p216 = por %p214, %p215
    %p218 = scmp.ne.s32.totalorder %s203, %s217
    %p219 = scmp.eq.s32.totalorder %s25, 0
    %p220 = por %p218, %p219
    %s222 = sadd.s32 %s221, 1
    %p225 = scmp.eq.s32.totalorder %s19, 1
    %p226 = scmp.ne.s32.totalorder %s221, %s223
    %p227 = scmp.eq.s32.totalorder %s19, 0
    %p228 = por %p226, %p227
    %p229 = scmp.ne.s32.totalorder %s221, %s223
    %p230 = scmp.eq.s32.totalorder %s24, 1
    %p231 = por %p229, %p230
    %p232 = scmp.ne.s32.totalorder %s223, %s224
    %p233 = scmp.eq.s32.totalorder %s24, 0
    %p234 = por %p232, %p233
    %p235 = scmp.ne.s32.totalorder %s223, %s224
    %p236 = scmp.eq.s32.totalorder %s25, 1
    %p237 = por %p235, %p236
    %p239 = scmp.ne.s32.totalorder %s224, %s238
    %p240 = scmp.eq.s32.totalorder %s25, 0
    %p241 = por %p239, %p240
    %s243 = sadd.s32 %s242, 1
    %p246 = scmp.eq.s32.totalorder %s19, 1
    %p247 = scmp.ne.s32.totalorder %s242, %s244
    %p248 = scmp.eq.s32.totalorder %s19, 0
    %p249 = por %p247, %p248
    %p250 = scmp.ne.s32.totalorder %s242, %s244
    %p251 = scmp.eq.s32.totalorder %s24, 1
    %p252 = por %p250, %p251
    %p253 = scmp.ne.s32.totalorder %s244, %s245
    %p254 = scmp.eq.s32.totalorder %s24, 0
    %p255 = por %p253, %p254
    %p256 = scmp.ne.s32.totalorder %s244, %s245
    %p257 = scmp.eq.s32.totalorder %s25, 1
    %p258 = por %p256, %p257
    %p260 = scmp.ne.s32.totalorder %s245, %s259
    %p261 = scmp.eq.s32.totalorder %s25, 0
    %p262 = por %p260, %p261
    %s264 = sadd.s32 %s263, 1
    %p267 = scmp.eq.s32.totalorder %s19, 1
    %p268 = scmp.ne.s32.totalorder %s263, %s265
    %p269 = scmp.eq.s32.totalorder %s19, 0
    %p270 = por %p268, %p269
    %p271 = scmp.ne.s32.totalorder %s263, %s265
    %p272 = scmp.eq.s32.totalorder %s24, 1
    %p273 = por %p271, %p272
    %p274 = scmp.ne.s32.totalorder %s265, %s266
    %p275 = scmp.eq.s32.totalorder %s24, 0
    %p276 = por %p274, %p275
    %p277 = scmp.ne.s32.totalorder %s265, %s266
    %p278 = scmp.eq.s32.totalorder %s25, 1
    %p279 = por %p277, %p278
    %p281 = scmp.ne.s32.totalorder %s266, %s280
    %p282 = scmp.eq.s32.totalorder %s25, 0
    %p283 = por %p281, %p282
    %s285 = sadd.s32 %s284, 1
    %p288 = scmp.eq.s32.totalorder %s19, 1
    %p289 = scmp.ne.s32.totalorder %s284, %s286
    %p290 = scmp.eq.s32.totalorder %s19, 0
    %p291 = por %p289, %p290
    %p292 = scmp.ne.s32.totalorder %s284, %s286
    %p293 = scmp.eq.s32.totalorder %s24, 1
    %p294 = por %p292, %p293
    %p295 = scmp.ne.s32.totalorder %s286, %s287
    %p296 = scmp.eq.s32.totalorder %s24, 0
    %p297 = por %p295, %p296
    %p298 = scmp.ne.s32.totalorder %s286, %s287
    %p299 = scmp.eq.s32.totalorder %s25, 1
    %p300 = por %p298, %p299
    %p302 = scmp.ne.s32.totalorder %s287, %s301
    %p303 = scmp.eq.s32.totalorder %s25, 0
    %p304 = por %p302, %p303
    %s305 = ssub.s32 %s19, %s26
    %p306 = scmp.eq.s32.totalorder %s305, 0
    %s308 = sadd.s32 %s307, 1
    %s309 = scalar_select %p306, %s307, %s308
    %p312 = pneg %p306
    %p313 = scmp.eq.s32.totalorder %s19, 1
    %p314 = por %p312, %p313
    %p315 = scmp.ne.s32.totalorder %s307, %s310
    %p316 = scmp.eq.s32.totalorder %s19, 0
    %p317 = por %p315, %p316
    %p318 = scmp.ne.s32.totalorder %s307, %s310
    %p319 = scmp.eq.s32.totalorder %s24, 1
    %p320 = por %p318, %p319
    %p321 = scmp.ne.s32.totalorder %s310, %s311
    %p322 = scmp.eq.s32.totalorder %s24, 0
    %p323 = por %p321, %p322
    %p324 = scmp.ne.s32.totalorder %s310, %s311
    %p325 = scmp.eq.s32.totalorder %s25, 1
    %p326 = por %p324, %p325
    %p328 = scmp.ne.s32.totalorder %s311, %s327
    %p329 = scmp.eq.s32.totalorder %s25, 0
    %p330 = por %p328, %p329
    %p331 = scmp.le.s32.totalorder 1, %s19
    %p332 = scmp.lt.s32.totalorder %s19, 3
    %p333 = pnand %p331, %p332
    %p334 = pneg %p333
    // Predicated region
    $region9: #{beamform_net_forward.1} parent=5 // pred_check
      _
    $region10: #{beamform_net_forward.1} parent=5 // pred_check_branch
      %336 = sbr.rel (%p333) target = $region12
    $region11: #{beamform_net_forward.1} parent=5 // pred_region
      %s337 = ssub.s32 %s19, 1
      // Predicated region
      $region13: #{beamform_net_forward.1} parent=11 // pred_check
        %p338 = pneg %p66
      $region14: #{beamform_net_forward.1} parent=11 // pred_check_branch
        %340 = sbr.rel (%p338) target = $region16
      $region15: #{beamform_net_forward.1} parent=11 // pred_region
        _
      $region16: #{beamform_net_forward.1} parent=11 // pred_fallthru
        _
      // Predicated region
      $region17: #{beamform_net_forward.1} parent=11 // pred_check
        %p341 = pneg %p87
      $region18: #{beamform_net_forward.1} parent=11 // pred_check_branch
        %343 = sbr.rel (%p341) target = $region20
      $region19: #{beamform_net_forward.1} parent=11 // pred_region
        _
      $region20: #{beamform_net_forward.1} parent=11 // pred_fallthru
        _
      // Predicated region
      $region21: #{beamform_net_forward.1} parent=11 // pred_check
        %p344 = pneg %p108
      $region22: #{beamform_net_forward.1} parent=11 // pred_check_branch
        %346 = sbr.rel (%p344) target = $region24
      $region23: #{beamform_net_forward.1} parent=11 // pred_region
        _
      $region24: #{beamform_net_forward.1} parent=11 // pred_fallthru
        _
      // Predicated region
      $region25: #{beamform_net_forward.1} parent=11 // pred_check
        %p347 = pneg %p129
      $region26: #{beamform_net_forward.1} parent=11 // pred_check_branch
        %349 = sbr.rel (%p347) target = $region28
      $region27: #{beamform_net_forward.1} parent=11 // pred_region
        _
      $region28: #{beamform_net_forward.1} parent=11 // pred_fallthru
        _
      // Predicated region
      $region29: #{beamform_net_forward.1} parent=11 // pred_check
        %p350 = pneg %p150
      $region30: #{beamform_net_forward.1} parent=11 // pred_check_branch
        %352 = sbr.rel (%p350) target = $region32
      $region31: #{beamform_net_forward.1} parent=11 // pred_region
        _
      $region32: #{beamform_net_forward.1} parent=11 // pred_fallthru
        _
      // Predicated region
      $region33: #{beamform_net_forward.1} parent=11 // pred_check
        %p353 = pneg %p171
      $region34: #{beamform_net_forward.1} parent=11 // pred_check_branch
        %355 = sbr.rel (%p353) target = $region36
      $region35: #{beamform_net_forward.1} parent=11 // pred_region
        _
      $region36: #{beamform_net_forward.1} parent=11 // pred_fallthru
        _
      // Predicated region
      $region37: #{beamform_net_forward.1} parent=11 // pred_check
        %p356 = pneg %p192
      $region38: #{beamform_net_forward.1} parent=11 // pred_check_branch
        %358 = sbr.rel (%p356) target = $region40
      $region39: #{beamform_net_forward.1} parent=11 // pred_region
        _
      $region40: #{beamform_net_forward.1} parent=11 // pred_fallthru
        _
      // Predicated region
      $region41: #{beamform_net_forward.1} parent=11 // pred_check
        %p359 = pneg %p213
      $region42: #{beamform_net_forward.1} parent=11 // pred_check_branch
        %361 = sbr.rel (%p359) target = $region44
      $region43: #{beamform_net_forward.1} parent=11 // pred_region
        _
      $region44: #{beamform_net_forward.1} parent=11 // pred_fallthru
        _
      // Predicated region
      $region45: #{beamform_net_forward.1} parent=11 // pred_check
        %p362 = pneg %p234
      $region46: #{beamform_net_forward.1} parent=11 // pred_check_branch
        %364 = sbr.rel (%p362) target = $region48
      $region47: #{beamform_net_forward.1} parent=11 // pred_region
        _
      $region48: #{beamform_net_forward.1} parent=11 // pred_fallthru
        _
      // Predicated region
      $region49: #{beamform_net_forward.1} parent=11 // pred_check
        %p365 = pneg %p255
      $region50: #{beamform_net_forward.1} parent=11 // pred_check_branch
        %367 = sbr.rel (%p365) target = $region52
      $region51: #{beamform_net_forward.1} parent=11 // pred_region
        _
      $region52: #{beamform_net_forward.1} parent=11 // pred_fallthru
        _
      // Predicated region
      $region53: #{beamform_net_forward.1} parent=11 // pred_check
        %p368 = pneg %p276
      $region54: #{beamform_net_forward.1} parent=11 // pred_check_branch
        %370 = sbr.rel (%p368) target = $region56
      $region55: #{beamform_net_forward.1} parent=11 // pred_region
        _
      $region56: #{beamform_net_forward.1} parent=11 // pred_fallthru
        _
      // Predicated region
      $region57: #{beamform_net_forward.1} parent=11 // pred_check
        %p371 = pneg %p297
      $region58: #{beamform_net_forward.1} parent=11 // pred_check_branch
        %373 = sbr.rel (%p371) target = $region60
      $region59: #{beamform_net_forward.1} parent=11 // pred_region
        _
      $region60: #{beamform_net_forward.1} parent=11 // pred_fallthru
        _
    $region12: #{beamform_net_forward.1} parent=5 // pred_fallthru
      _
    %p374 = scmp.lt.s32.totalorder %s19, 2
    // Predicated region
    $region61: #{beamform_net_forward.1} parent=5 // pred_check
      %p375 = pneg %p374
    $region62: #{beamform_net_forward.1} parent=5 // pred_check_branch
      %377 = sbr.rel (%p375) target = $region64
    $region63: #{beamform_net_forward.1} parent=5 // pred_region
      // Predicated region
      $region65: #{beamform_net_forward.1} parent=63 // pred_check
        %p378 = pneg %p39
      $region66: #{beamform_net_forward.1} parent=63 // pred_check_branch
        %380 = sbr.rel (%p378) target = $region68
      $region67: #{beamform_net_forward.1} parent=63 // pred_region
        %p381 = scmp.lt.s32.totalorder %s19, 1
        %s382 = scalar_select %p381, %s19, 1
        %s383 = smul.addr %s382, 2
        %s384 = smul.addr %s383, 8
        %s385 = scalar_lea.vmem %s0, %s384
      $region68: #{beamform_net_forward.1} parent=63 // pred_fallthru
        _
    $region64: #{beamform_net_forward.1} parent=5 // pred_fallthru
      _
    %p386 = scmp.le.s32.totalorder 1, %s19
    %p387 = scmp.lt.s32.totalorder %s19, 3
    %p388 = pnand %p386, %p387
    %p389 = pneg %p388
    // Predicated region
    $region69: #{beamform_net_forward.1} parent=5 // pred_check
      _
    $region70: #{beamform_net_forward.1} parent=5 // pred_check_branch
      %391 = sbr.rel (%p388) target = $region72
    $region71: #{beamform_net_forward.1} parent=5 // pred_region
      %s392 = ssub.s32 %s19, 1
      %p393 = scmp.lt.s32.totalorder %s24, 1
      %s394 = scalar_select %p393, %s24, 1
      %s395 = smul.addr %s394, 2
      %s396 = smul.addr %s395, 8
      %s397 = scalar_lea.vmem %s0, %s396
      %p398 = pneg %p45
      %p399 = pneg %p42
      %p400 = pneg %p66
      %p401 = pneg %p63
      %p402 = pneg %p87
      %p403 = pneg %p84
      %p404 = pneg %p108
      %p405 = pneg %p105
      %p406 = pneg %p129
      %p407 = pneg %p126
      %p408 = pneg %p150
      %p409 = pneg %p147
      %p410 = pneg %p171
      %p411 = pneg %p168
      %p412 = pneg %p192
      %p413 = pneg %p189
      %p414 = pneg %p213
      %p415 = pneg %p210
      %p416 = pneg %p234
      %p417 = pneg %p231
      %p418 = pneg %p255
      %p419 = pneg %p252
      %p420 = pneg %p276
      %p421 = pneg %p273
      %p422 = pneg %p297
      %p423 = pneg %p294
      %p424 = pneg %p323
      %p425 = pneg %p320
      %p426 = scmp.lt.s32.totalorder %s24, 1
      %s427 = scalar_select %p426, %s24, 1
      %s428 = smul.addr %s427, 2
      %s429 = smul.addr %s428, 8
      %s430 = scalar_lea.vmem %s13, %s429
      %p431 = scmp.lt.s32.totalorder %s24, 1
      %s432 = scalar_select %p431, %s24, 1
      %s433 = smul.addr %s432, 2
      %s434 = smul.addr %s433, 8
      %s435 = scalar_lea.vmem %s0, %s434
      %p436 = scmp.lt.s32.totalorder %s24, 1
      %s437 = scalar_select %p436, %s24, 1
      %s438 = smul.addr %s437, 2
      %s439 = smul.addr %s438, 8
      %s440 = scalar_lea.vmem %s13, %s439
      %v442 = vld [vmem:[%s435] sm:$0xff]
      %v443 = vld [vmem:[%s435 + $0x8] sm:$0xff]
      %vm444 = vcmask 523264
      %445 = vst.msk [vmem:[#allocation2] sm:$0xff] %vm444, 0.0
      %446 = vst.msk [vmem:[#allocation2 + $0x8] sm:$0xff] %vm444, 0.0
      %vm447 = vcmask 521216
      %448 = vst.msk [vmem:[#allocation2 + $0x10] sm:$0x3f] %vm447, 0.0
      %vm449 = vcmask 261120
      %450 = vst.msk [vmem:[#allocation2 + $0x3] sm:$0xff] %vm449, %v442
      %451 = vst.msk [vmem:[#allocation2 + $0xb] sm:$0xff] %vm449, %v443
      %v452 = vld [vmem:[#allocation2] sm:$0xff]
      %v453 = vld [vmem:[#allocation2 + $0x8] sm:$0xff]
      %454 = vst.msk [vmem:[#allocation3] sm:$0xff] %vm449, %v452
      %455 = vst.msk [vmem:[#allocation3 + $0x18] sm:$0xff] %vm449, %v453
      %v456 = vld [vmem:[#allocation2 + $0x1] sm:$0xff]
      %v457 = vld [vmem:[#allocation2 + $0x9] sm:$0xff]
      %460 = vrot.lane.b32.xlu0 %v456, 32
      %v461 = vpop.permute.xlu0 %460
      %462 = vrot.lane.b32.xlu0 %v457, 32
      %v463 = vpop.permute.xlu0 %462
      %vm466 = vcmask 523520
      %467 = vst.msk [vmem:[#allocation3] sm:$0xff] %vm466, %v461
      %468 = vst.msk [vmem:[#allocation3 + $0x18] sm:$0xff] %vm466, %v463
      %v469 = vld [vmem:[#allocation2 + $0x2] sm:$0xff]
      %v470 = vld [vmem:[#allocation2 + $0xa] sm:$0xff]
      %473 = vrot.lane.b32.xlu0 %v469, 64
      %v474 = vpop.permute.xlu0 %473
      %475 = vrot.lane.b32.xlu0 %v470, 64
      %v476 = vpop.permute.xlu0 %475
      %vm479 = vcmask 785920
      %480 = vst.msk [vmem:[#allocation3] sm:$0xff] %vm479, %v474
      %481 = vst.msk [vmem:[#allocation3 + $0x18] sm:$0xff] %vm479, %v476
      %v482 = vld [vmem:[#allocation2 + $0x3] sm:$0xff]
      %v483 = vld [vmem:[#allocation2 + $0xb] sm:$0xff]
      %486 = vrot.lane.b32.xlu0 %v482, 96
      %v487 = vpop.permute.xlu0 %486
      %488 = vrot.lane.b32.xlu0 %v483, 96
      %v489 = vpop.permute.xlu0 %488
      %vm492 = vcmask 1048320
      %493 = vst.msk [vmem:[#allocation3] sm:$0xff] %vm492, %v487
      %494 = vst.msk [vmem:[#allocation3 + $0x18] sm:$0xff] %vm492, %v489
      %v495 = vld [vmem:[#allocation2 + $0x4] sm:$0xff]
      %v496 = vld [vmem:[#allocation2 + $0xc] sm:$0xff]
      %497 = vst.msk [vmem:[#allocation3 + $0x8] sm:$0xff] %vm449, %v495
      %498 = vst.msk [vmem:[#allocation3 + $0x20] sm:$0xff] %vm449, %v496
      %v499 = vld [vmem:[#allocation2 + $0x5] sm:$0xff]
      %v500 = vld [vmem:[#allocation2 + $0xd] sm:$0xff]
      %503 = vrot.lane.b32.xlu0 %v499, 32
      %v504 = vpop.permute.xlu0 %503
      %505 = vrot.lane.b32.xlu0 %v500, 32
      %v506 = vpop.permute.xlu0 %505
      %509 = vst.msk [vmem:[#allocation3 + $0x8] sm:$0xff] %vm466, %v504
      %510 = vst.msk [vmem:[#allocation3 + $0x20] sm:$0xff] %vm466, %v506
      %v511 = vld [vmem:[#allocation2 + $0x6] sm:$0xff]
      %v512 = vld [vmem:[#allocation2 + $0xe] sm:$0xff]
      %515 = vrot.lane.b32.xlu0 %v511, 64
      %v516 = vpop.permute.xlu0 %515
      %517 = vrot.lane.b32.xlu0 %v512, 64
      %v518 = vpop.permute.xlu0 %517
      %521 = vst.msk [vmem:[#allocation3 + $0x8] sm:$0xff] %vm479, %v516
      %522 = vst.msk [vmem:[#allocation3 + $0x20] sm:$0xff] %vm479, %v518
      %v523 = vld [vmem:[#allocation3] sm:$0xff]
      %v524 = vld [vmem:[#allocation3 + $0x8] sm:$0xff]
      %v525 = vld [vmem:[#allocation3 + $0x18] sm:$0xff]
      %v526 = vld [vmem:[#allocation3 + $0x20] sm:$0xff]
      %v527 = vpack.c.bf16 %v525, %v523
      %v528 = vpack.c.bf16 %v526, %v524
      %v529 = vld [vmem:[%s1] sm:$0xf]
      %v530 = vld [vmem:[%s1 + $0x4] sm:$0xf]
      %v531 = vld [vmem:[%s1 + $0x8] sm:$0xf]
      %v532 = vld [vmem:[%s1 + $0xc] sm:$0xf]
      %v533 = vld [vmem:[%s1 + $0x10] sm:$0xf]
      %v534 = vld [vmem:[%s1 + $0x14] sm:$0xf]
      %v535 = vld [vmem:[%s1 + $0x18] sm:$0xf]
      %v536 = vld [vmem:[%s1 + $0x1c] sm:$0xf]
      %v537 = vld [vmem:[%s1 + $0x20] sm:$0xf]
      %v538 = vld [vmem:[%s1 + $0x24] sm:$0xf]
      %v539 = vld [vmem:[%s1 + $0x28] sm:$0xf]
      %v540 = vld [vmem:[%s1 + $0x2c] sm:$0xf]
      %v541 = vld [vmem:[%s1 + $0x30] sm:$0xf]
      %v542 = vld [vmem:[%s1 + $0x34] sm:$0xf]
      %v543 = vld [vmem:[%s1 + $0x38] sm:$0xf]
      %v544 = vld [vmem:[%s1 + $0x3c] sm:$0xf]
      %v545 = vld [vmem:[%s1 + $0x40] sm:$0xf]
      %v546 = vld [vmem:[%s1 + $0x44] sm:$0xf]
      %v547 = vld [vmem:[%s1 + $0x48] sm:$0xf]
      %v548 = vld [vmem:[%s1 + $0x4c] sm:$0xf]
      %v549 = vld [vmem:[%s1 + $0x50] sm:$0xf]
      %v550 = vld [vmem:[%s1 + $0x54] sm:$0xf]
      %v551 = vld [vmem:[%s1 + $0x58] sm:$0xf]
      %v552 = vld [vmem:[%s1 + $0x5c] sm:$0xf]
      %v553 = vld [vmem:[%s1 + $0x60] sm:$0xf]
      %v554 = vld [vmem:[%s1 + $0x64] sm:$0xf]
      %v555 = vld [vmem:[%s1 + $0x68] sm:$0xf]
      %v556 = vld [vmem:[%s1 + $0x6c] sm:$0xf]
      %v585 = vunpack.c.l.b16 %v529
      %v586 = vunpack.c.l.b16 %v530
      %v587 = vunpack.c.l.b16 %v531
      %v588 = vunpack.c.l.b16 %v532
      %v589 = vunpack.c.l.b16 %v533
      %v590 = vunpack.c.l.b16 %v534
      %v591 = vunpack.c.l.b16 %v535
      %v592 = vunpack.c.l.b16 %v536
      %v593 = vunpack.c.l.b16 %v537
      %v594 = vunpack.c.l.b16 %v538
      %v595 = vunpack.c.l.b16 %v539
      %v596 = vunpack.c.l.b16 %v540
      %v597 = vunpack.c.l.b16 %v541
      %v598 = vunpack.c.l.b16 %v542
      %v599 = vunpack.c.l.b16 %v543
      %v600 = vunpack.c.l.b16 %v544
      %v601 = vunpack.c.l.b16 %v545
      %v602 = vunpack.c.l.b16 %v546
      %v603 = vunpack.c.l.b16 %v547
      %v604 = vunpack.c.l.b16 %v548
      %v605 = vunpack.c.l.b16 %v549
      %v606 = vunpack.c.l.b16 %v550
      %v607 = vunpack.c.l.b16 %v551
      %v608 = vunpack.c.l.b16 %v552
      %v609 = vunpack.c.l.b16 %v553
      %v610 = vunpack.c.l.b16 %v554
      %v611 = vunpack.c.l.b16 %v555
      %v612 = vunpack.c.l.b16 %v556
      %v613 = vpack.c.b16 %v586, %v585
      %v614 = vpack.c.b16 %v588, %v587
      %v615 = vpack.c.b16 %v590, %v589
      %v616 = vpack.c.b16 %v592, %v591
      %v617 = vpack.c.b16 %v594, %v593
      %v618 = vpack.c.b16 %v596, %v595
      %v619 = vpack.c.b16 %v598, %v597
      %v620 = vpack.c.b16 %v600, %v599
      %v621 = vpack.c.b16 %v602, %v601
      %v622 = vpack.c.b16 %v604, %v603
      %v623 = vpack.c.b16 %v606, %v605
      %v624 = vpack.c.b16 %v608, %v607
      %v625 = vpack.c.b16 %v610, %v609
      %v626 = vpack.c.b16 %v612, %v611
      %vm641 = vcmask 785408
      %v643 = vsel %vm641, %v528, 0
      %645 = vmatprep.subr.bf16.mxu0 0
      %646 = vmatpush1.bf16.msra.mxu0 %v613
      %647 = vmatprep.subr.bf16.mxu0 0
      %648 = vmatpush1.bf16.msra.mxu0 %v614
      %649 = vmatprep.subr.bf16.mxu0 0
      %650 = vmatpush1.bf16.msra.mxu0 %v615
      %651 = vmatprep.subr.bf16.mxu0 0
      %652 = vmatpush1.bf16.msra.mxu0 %v616
      %653 = vmatprep.subr.bf16.mxu0 0
      %654 = vmatpush1.bf16.msra.mxu0 %v617
      %655 = vmatprep.subr.bf16.mxu0 0
      %656 = vmatpush1.bf16.msra.mxu0 %v618
      %657 = vmatprep.subr.bf16.mxu0 0
      %658 = vmatpush1.bf16.msra.mxu0 %v619
      %659 = vmatprep.subr.bf16.mxu0 0
      %660 = vmatpush1.bf16.msra.mxu0 %v620
      %661 = vmatprep.subr.bf16.mxu0 0
      %662 = vmatpush1.bf16.msra.mxu0 %v621
      %663 = vmatprep.subr.bf16.mxu0 0
      %664 = vmatpush1.bf16.msra.mxu0 %v622
      %665 = vmatprep.subr.bf16.mxu0 0
      %666 = vmatpush1.bf16.msra.mxu0 %v623
      %667 = vmatprep.subr.bf16.mxu0 0
      %668 = vmatpush1.bf16.msra.mxu0 %v624
      %669 = vmatprep.subr.bf16.mxu0 0
      %670 = vmatpush1.bf16.msra.mxu0 %v625
      %671 = vmatprep.subr.bf16.mxu0 0
      %672 = vmatpush1.bf16.msra.mxu0 %v626
      %673 = vmatprep.subr.bf16.mxu0 0
      %674 = vmatpush1.bf16.msra.mxu0 0
      %675 = vmatprep.subr.bf16.mxu0 0
      %676 = vmatpush1.bf16.msra.mxu0 0
      %677 = vmatprep.mubr.bf16.mxu0 %v643
      %678 = vmatmul.mubr.bf16.gmra.mrb[0].mxu0 %v527
      %v679 = vpop.f32.mrb[0].mxu0
      %v680 = vadd.f32 0.0, %v679
      %v681 = vpop.f32.mrb[0].mxu0
      %v682 = vpop.f32.mrb[0].mxu0
      %v683 = vadd.f32 0.0, %v682
      %v684 = vpop.f32.mrb[0].mxu0
      %685 = vdwg.mxu0
      %v686 = vld [vmem:[%s2] sm:$0x1]
      %v688 = vlaneseq
      %v689 = vshrl.u32 %v688, 7
      %v690 = vsub.s32 0, %v689
      %v691 = vrot.slane %v686, %v690
      %v693 = vmul.f32 %v680, %v691
      %v694 = vmul.f32 %v683, %v691
      %v695 = vld [vmem:[%s3] sm:$0x1]
      %v697 = vlaneseq
      %v698 = vshrl.u32 %v697, 7
      %v699 = vsub.s32 0, %v698
      %v700 = vrot.slane %v695, %v699
      %v702 = vadd.f32 %v693, %v700
      %v703 = vadd.f32 %v694, %v700
      %vm704 = vcmp.ge.f32.partialorder %v702, 0.0
      %vm705 = vcmp.ge.f32.partialorder %v703, 0.0
      %v706 = vmul.f32 %v702, 0.3
      %v707 = vmul.f32 %v703, 0.3
      %v708 = vsel %vm704, %v702, %v706
      %v709 = vsel %vm705, %v703, %v707
      %710 = vst.msk [vmem:[#allocation2] sm:$0xff] %vm444, 0.0
      %711 = vst.msk [vmem:[#allocation2 + $0x8] sm:$0xff] %vm444, 0.0
      %712 = vst.msk [vmem:[#allocation2 + $0x10] sm:$0x3f] %vm447, 0.0
      %713 = vst.msk [vmem:[#allocation2 + $0x2] sm:$0xff] %vm444, %v708
      %714 = vst.msk [vmem:[#allocation2 + $0xa] sm:$0xff] %vm444, %v709
      %v715 = vld [vmem:[#allocation2] sm:$0xff]
      %v716 = vld [vmem:[#allocation2 + $0x8] sm:$0xff]
      %717 = vst.msk [vmem:[#allocation3] sm:$0xff] %vm444, %v715
      %718 = vst.msk [vmem:[#allocation3 + $0x18] sm:$0xff] %vm444, %v716
      %v719 = vld [vmem:[#allocation2 + $0x1] sm:$0xff]
      %v720 = vld [vmem:[#allocation2 + $0x9] sm:$0xff]
      %723 = vrot.lane.b32.xlu0 %v719, 64
      %v724 = vpop.permute.xlu0 %723
      %725 = vrot.lane.b32.xlu0 %v720, 64
      %v726 = vpop.permute.xlu0 %725
      %vm729 = vcmask 1048064
      %730 = vst.msk [vmem:[#allocation3] sm:$0xff] %vm729, %v724
      %731 = vst.msk [vmem:[#allocation3 + $0x18] sm:$0xff] %vm729, %v726
      %v732 = vld [vmem:[#allocation2 + $0x2] sm:$0xff]
      %v733 = vld [vmem:[#allocation2 + $0xa] sm:$0xff]
      %734 = vst.msk [vmem:[#allocation3 + $0x8] sm:$0xff] %vm444, %v732
      %735 = vst.msk [vmem:[#allocation3 + $0x20] sm:$0xff] %vm444, %v733
      %v736 = vld [vmem:[#allocation2 + $0x3] sm:$0xff]
      %v737 = vld [vmem:[#allocation2 + $0xb] sm:$0xff]
      %740 = vrot.lane.b32.xlu0 %v736, 64
      %v741 = vpop.permute.xlu0 %740
      %742 = vrot.lane.b32.xlu0 %v737, 64
      %v743 = vpop.permute.xlu0 %742
      %746 = vst.msk [vmem:[#allocation3 + $0x8] sm:$0xff] %vm729, %v741
      %747 = vst.msk [vmem:[#allocation3 + $0x20] sm:$0xff] %vm729, %v743
      %v748 = vld [vmem:[#allocation2 + $0x4] sm:$0xff]
      %v749 = vld [vmem:[#allocation2 + $0xc] sm:$0xff]
      %750 = vst.msk [vmem:[#allocation3 + $0x10] sm:$0xff] %vm444, %v748
      %751 = vst.msk [vmem:[#allocation3 + $0x28] sm:$0xff] %vm444, %v749
      %v752 = vld [vmem:[#allocation3] sm:$0xff]
      %v753 = vld [vmem:[#allocation3 + $0x8] sm:$0xff]
      %v754 = vld [vmem:[#allocation3 + $0x10] sm:$0xff]
      %v755 = vld [vmem:[#allocation3 + $0x18] sm:$0xff]
      %v756 = vld [vmem:[#allocation3 + $0x20] sm:$0xff]
      %v757 = vld [vmem:[#allocation3 + $0x28] sm:$0xff]
      %v758 = vpack.c.bf16 %v755, %v752
      %v759 = vpack.c.bf16 %v756, %v753
      %v760 = vpack.c.bf16 %v757, %v754
      %v761 = vld [vmem:[%s4] sm:$0xf]
      %v762 = vld [vmem:[%s4 + $0x4] sm:$0xf]
      %v763 = vld [vmem:[%s4 + $0x8] sm:$0xf]
      %v764 = vld [vmem:[%s4 + $0xc] sm:$0xf]
      %v765 = vld [vmem:[%s4 + $0x10] sm:$0xf]
      %v766 = vld [vmem:[%s4 + $0x14] sm:$0xf]
      %v767 = vld [vmem:[%s4 + $0x18] sm:$0xf]
      %v768 = vld [vmem:[%s4 + $0x1c] sm:$0xf]
      %v769 = vld [vmem:[%s4 + $0x20] sm:$0xf]
      %v770 = vld [vmem:[%s4 + $0x24] sm:$0xf]
      %v771 = vld [vmem:[%s4 + $0x28] sm:$0xf]
      %v772 = vld [vmem:[%s4 + $0x2c] sm:$0xf]
      %v773 = vld [vmem:[%s4 + $0x30] sm:$0xf]
      %v774 = vld [vmem:[%s4 + $0x34] sm:$0xf]
      %v775 = vld [vmem:[%s4 + $0x38] sm:$0xf]
      %v776 = vld [vmem:[%s4 + $0x3c] sm:$0xf]
      %v777 = vld [vmem:[%s4 + $0x40] sm:$0xf]
      %v778 = vld [vmem:[%s4 + $0x44] sm:$0xf]
      %v779 = vld [vmem:[%s4 + $0x48] sm:$0xf]
      %v780 = vld [vmem:[%s4 + $0x4c] sm:$0xf]
      %v781 = vld [vmem:[%s4 + $0x50] sm:$0xf]
      %v782 = vld [vmem:[%s4 + $0x54] sm:$0xf]
      %v783 = vld [vmem:[%s4 + $0x58] sm:$0xf]
      %v784 = vld [vmem:[%s4 + $0x5c] sm:$0xf]
      %v785 = vld [vmem:[%s4 + $0x60] sm:$0xf]
      %v786 = vld [vmem:[%s4 + $0x64] sm:$0xf]
      %v787 = vld [vmem:[%s4 + $0x68] sm:$0xf]
      %v788 = vld [vmem:[%s4 + $0x6c] sm:$0xf]
      %v789 = vld [vmem:[%s4 + $0x70] sm:$0xf]
      %v790 = vld [vmem:[%s4 + $0x74] sm:$0xf]
      %v791 = vld [vmem:[%s4 + $0x78] sm:$0xf]
      %v792 = vld [vmem:[%s4 + $0x7c] sm:$0xf]
      %v793 = vld [vmem:[%s4 + $0x80] sm:$0xf]
      %v794 = vld [vmem:[%s4 + $0x84] sm:$0xf]
      %v795 = vld [vmem:[%s4 + $0x88] sm:$0xf]
      %v796 = vld [vmem:[%s4 + $0x8c] sm:$0xf]
      %v797 = vld [vmem:[%s4 + $0x90] sm:$0xf]
      %v798 = vld [vmem:[%s4 + $0x94] sm:$0xf]
      %v799 = vld [vmem:[%s4 + $0x98] sm:$0xf]
      %v800 = vld [vmem:[%s4 + $0x9c] sm:$0xf]
      %v841 = vunpack.c.l.b16 %v761
      %v842 = vunpack.c.l.b16 %v762
      %v843 = vunpack.c.l.b16 %v763
      %v844 = vunpack.c.l.b16 %v764
      %v845 = vunpack.c.l.b16 %v765
      %v846 = vunpack.c.l.b16 %v766
      %v847 = vunpack.c.l.b16 %v767
      %v848 = vunpack.c.l.b16 %v768
      %v849 = vunpack.c.l.b16 %v769
      %v850 = vunpack.c.l.b16 %v770
      %v851 = vunpack.c.l.b16 %v771
      %v852 = vunpack.c.l.b16 %v772
      %v853 = vunpack.c.l.b16 %v773
      %v854 = vunpack.c.l.b16 %v774
      %v855 = vunpack.c.l.b16 %v775
      %v856 = vunpack.c.l.b16 %v776
      %v857 = vunpack.c.l.b16 %v777
      %v858 = vunpack.c.l.b16 %v778
      %v859 = vunpack.c.l.b16 %v779
      %v860 = vunpack.c.l.b16 %v780
      %v861 = vunpack.c.l.b16 %v781
      %v862 = vunpack.c.l.b16 %v782
      %v863 = vunpack.c.l.b16 %v783
      %v864 = vunpack.c.l.b16 %v784
      %v865 = vunpack.c.l.b16 %v785
      %v866 = vunpack.c.l.b16 %v786
      %v867 = vunpack.c.l.b16 %v787
      %v868 = vunpack.c.l.b16 %v788
      %v869 = vunpack.c.l.b16 %v789
      %v870 = vunpack.c.l.b16 %v790
      %v871 = vunpack.c.l.b16 %v791
      %v872 = vunpack.c.l.b16 %v792
      %v873 = vunpack.c.l.b16 %v793
      %v874 = vunpack.c.l.b16 %v794
      %v875 = vunpack.c.l.b16 %v795
      %v876 = vunpack.c.l.b16 %v796
      %v877 = vunpack.c.l.b16 %v797
      %v878 = vunpack.c.l.b16 %v798
      %v879 = vunpack.c.l.b16 %v799
      %v880 = vunpack.c.l.b16 %v800
      %v881 = vpack.c.b16 %v842, %v841
      %v882 = vpack.c.b16 %v844, %v843
      %v883 = vpack.c.b16 %v846, %v845
      %v884 = vpack.c.b16 %v848, %v847
      %v885 = vpack.c.b16 %v850, %v849
      %v886 = vpack.c.b16 %v852, %v851
      %v887 = vpack.c.b16 %v854, %v853
      %v888 = vpack.c.b16 %v856, %v855
      %v889 = vpack.c.b16 %v858, %v857
      %v890 = vpack.c.b16 %v860, %v859
      %v891 = vpack.c.b16 %v862, %v861
      %v892 = vpack.c.b16 %v864, %v863
      %v893 = vpack.c.b16 %v866, %v865
      %v894 = vpack.c.b16 %v868, %v867
      %v895 = vpack.c.b16 %v870, %v869
      %v896 = vpack.c.b16 %v872, %v871
      %v897 = vpack.c.b16 %v874, %v873
      %v898 = vpack.c.b16 %v876, %v875
      %v899 = vpack.c.b16 %v878, %v877
      %v900 = vpack.c.b16 %v880, %v879
      %v922 = vsel %vm444, %v760, 0
      %924 = vmatprep.subr.bf16.mxu0 0
      %925 = vmatpush1.bf16.msra.mxu0 %v881
      %926 = vmatprep.subr.bf16.mxu0 0
      %927 = vmatpush1.bf16.msra.mxu0 %v882
      %928 = vmatprep.subr.bf16.mxu0 0
      %929 = vmatpush1.bf16.msra.mxu0 %v883
      %930 = vmatprep.subr.bf16.mxu0 0
      %931 = vmatpush1.bf16.msra.mxu0 %v884
      %932 = vmatprep.subr.bf16.mxu0 0
      %933 = vmatpush1.bf16.msra.mxu0 %v885
      %934 = vmatprep.subr.bf16.mxu0 0
      %935 = vmatpush1.bf16.msra.mxu0 %v886
      %936 = vmatprep.subr.bf16.mxu0 0
      %937 = vmatpush1.bf16.msra.mxu0 %v887
      %938 = vmatprep.subr.bf16.mxu0 0
      %939 = vmatpush1.bf16.msra.mxu0 %v888
      %940 = vmatprep.subr.bf16.mxu0 0
      %941 = vmatpush1.bf16.msra.mxu0 %v889
      %942 = vmatprep.subr.bf16.mxu0 0
      %943 = vmatpush1.bf16.msra.mxu0 %v890
      %944 = vmatprep.subr.bf16.mxu0 0
      %945 = vmatpush1.bf16.msra.mxu0 %v891
      %946 = vmatprep.subr.bf16.mxu0 0
      %947 = vmatpush1.bf16.msra.mxu0 %v892
      %948 = vmatprep.subr.bf16.mxu0 0
      %949 = vmatpush1.bf16.msra.mxu0 %v893
      %950 = vmatprep.subr.bf16.mxu0 0
      %951 = vmatpush1.bf16.msra.mxu0 %v894
      %952 = vmatprep.subr.bf16.mxu0 0
      %953 = vmatpush1.bf16.msra.mxu0 %v895
      %954 = vmatprep.subr.bf16.mxu0 0
      %955 = vmatpush1.bf16.msra.mxu0 %v896
      %956 = vmatprep.mubr.bf16.mxu0 %v759
      %957 = vmatmul.mubr.bf16.gmra.mrb[0].mxu0 %v758
      %v958 = vpop.f32.mrb[0].mxu0
      %v959 = vadd.f32 0.0, %v958
      %v960 = vpop.f32.mrb[0].mxu0
      %v961 = vpop.f32.mrb[0].mxu0
      %v962 = vadd.f32 0.0, %v961
      %v963 = vpop.f32.mrb[0].mxu0
      %964 = vdwg.mxu0
      %965 = vmatprep.subr.bf16.mxu0 0
      %966 = vmatpush1.bf16.msra.mxu0 %v897
      %967 = vmatprep.subr.bf16.mxu0 0
      %968 = vmatpush1.bf16.msra.mxu0 %v898
      %969 = vmatprep.subr.bf16.mxu0 0
      %970 = vmatpush1.bf16.msra.mxu0 %v899
      %971 = vmatprep.subr.bf16.mxu0 0
      %972 = vmatpush1.bf16.msra.mxu0 %v900
      %973 = vmatprep.subr.bf16.mxu0 0
      %974 = vmatpush1.bf16.msra.mxu0 0
      %975 = vmatprep.subr.bf16.mxu0 0
      %976 = vmatpush1.bf16.msra.mxu0 0
      %977 = vmatprep.subr.bf16.mxu0 0
      %978 = vmatpush1.bf16.msra.mxu0 0
      %979 = vmatprep.subr.bf16.mxu0 0
      %980 = vmatpush1.bf16.msra.mxu0 0
      %981 = vmatprep.subr.bf16.mxu0 0
      %982 = vmatpush1.bf16.msra.mxu0 0
      %983 = vmatprep.subr.bf16.mxu0 0
      %984 = vmatpush1.bf16.msra.mxu0 0
      %985 = vmatprep.subr.bf16.mxu0 0
      %986 = vmatpush1.bf16.msra.mxu0 0
      %987 = vmatprep.subr.bf16.mxu0 0
      %988 = vmatpush1.bf16.msra.mxu0 0
      %989 = vmatprep.subr.bf16.mxu0 0
      %990 = vmatpush1.bf16.msra.mxu0 0
      %991 = vmatprep.subr.bf16.mxu0 0
      %992 = vmatpush1.bf16.msra.mxu0 0
      %993 = vmatprep.subr.bf16.mxu0 0
      %994 = vmatpush1.bf16.msra.mxu0 0
      %995 = vmatprep.subr.bf16.mxu0 0
      %996 = vmatpush1.bf16.msra.mxu0 0
      %997 = vmatprep.mubr.bf16.mxu0 0
      %998 = vmatmul.mubr.bf16.gmra.mrb[0].mxu0 %v922
      %v999 = vpop.f32.mrb[0].mxu0
      %v1000 = vadd.f32 %v959, %v999
      %v1001 = vpop.f32.mrb[0].mxu0
      %v1002 = vpop.f32.mrb[0].mxu0
      %v1003 = vadd.f32 %v962, %v1002
      %v1004 = vpop.f32.mrb[0].mxu0
      %1005 = vdwg.mxu0
      %v1006 = vld [vmem:[%s5] sm:$0x1]
      %v1008 = vlaneseq
      %v1009 = vshrl.u32 %v1008, 7
      %v1010 = vsub.s32 0, %v1009
      %v1011 = vrot.slane %v1006, %v1010
      %v1013 = vmul.f32 %v1000, %v1011
      %v1014 = vmul.f32 %v1003, %v1011
      %v1015 = vld [vmem:[%s6] sm:$0x1]
      %v1017 = vlaneseq
      %v1018 = vshrl.u32 %v1017, 7
      %v1019 = vsub.s32 0, %v1018
      %v1020 = vrot.slane %v1015, %v1019
      %v1022 = vadd.f32 %v1013, %v1020
      %v1023 = vadd.f32 %v1014, %v1020
      %vm1024 = vcmp.ge.f32.partialorder %v1022, 0.0
      %vm1025 = vcmp.ge.f32.partialorder %v1023, 0.0
      %v1026 = vmul.f32 %v1022, 0.3
      %v1027 = vmul.f32 %v1023, 0.3
      %v1028 = vsel %vm1024, %v1022, %v1026
      %v1029 = vsel %vm1025, %v1023, %v1027
      %1030 = vst.msk [vmem:[#allocation2] sm:$0xff] %vm444, 0.0
      %1031 = vst.msk [vmem:[#allocation2 + $0x8] sm:$0xff] %vm444, 0.0
      %1032 = vst.msk [vmem:[#allocation2 + $0x10] sm:$0x3f] %vm447, 0.0
      %1033 = vst.msk [vmem:[#allocation2 + $0x1] sm:$0xff] %vm449, %v1028
      %1034 = vst.msk [vmem:[#allocation2 + $0x9] sm:$0xff] %vm449, %v1029
      %v1035 = vld [vmem:[#allocation2] sm:$0xff]
      %v1036 = vld [vmem:[#allocation2 + $0x8] sm:$0xff]
      %1037 = vst.msk [vmem:[#allocation3] sm:$0xff] %vm449, %v1035
      %1038 = vst.msk [vmem:[#allocation3 + $0x18] sm:$0xff] %vm449, %v1036
      %v1039 = vld [vmem:[#allocation2 + $0x1] sm:$0xff]
      %v1040 = vld [vmem:[#allocation2 + $0x9] sm:$0xff]
      %1043 = vrot.lane.b32.xlu0 %v1039, 32
      %v1044 = vpop.permute.xlu0 %1043
      %1045 = vrot.lane.b32.xlu0 %v1040, 32
      %v1046 = vpop.permute.xlu0 %1045
      %1049 = vst.msk [vmem:[#allocation3] sm:$0xff] %vm466, %v1044
      %1050 = vst.msk [vmem:[#allocation3 + $0x18] sm:$0xff] %vm466, %v1046
      %v1051 = vld [vmem:[#allocation2 + $0x2] sm:$0xff]
      %v1052 = vld [vmem:[#allocation2 + $0xa] sm:$0xff]
      %1055 = vrot.lane.b32.xlu0 %v1051, 64
      %v1056 = vpop.permute.xlu0 %1055
      %1057 = vrot.lane.b32.xlu0 %v1052, 64
      %v1058 = vpop.permute.xlu0 %1057
      %1061 = vst.msk [vmem:[#allocation3] sm:$0xff] %vm479, %v1056
      %1062 = vst.msk [vmem:[#allocation3 + $0x18] sm:$0xff] %vm479, %v1058
      %v1063 = vld [vmem:[#allocation3] sm:$0xff]
      %v1064 = vld [vmem:[#allocation3 + $0x18] sm:$0xff]
      %v1065 = vpack.c.bf16 %v1064, %v1063
      %v1066 = vld [vmem:[%s7] sm:$0xf]
      %v1067 = vld [vmem:[%s7 + $0x4] sm:$0xf]
      %v1068 = vld [vmem:[%s7 + $0x8] sm:$0xf]
      %v1069 = vld [vmem:[%s7 + $0xc] sm:$0xf]
      %v1070 = vld [vmem:[%s7 + $0x10] sm:$0xf]
      %v1071 = vld [vmem:[%s7 + $0x14] sm:$0xf]
      %v1072 = vld [vmem:[%s7 + $0x18] sm:$0xf]
      %v1073 = vld [vmem:[%s7 + $0x1c] sm:$0xf]
      %v1074 = vld [vmem:[%s7 + $0x20] sm:$0xf]
      %v1075 = vld [vmem:[%s7 + $0x24] sm:$0xf]
      %v1076 = vld [vmem:[%s7 + $0x28] sm:$0xf]
      %v1077 = vld [vmem:[%s7 + $0x2c] sm:$0xf]
      %v1090 = vunpack.c.l.b16 %v1066
      %v1091 = vunpack.c.l.b16 %v1067
      %v1092 = vunpack.c.l.b16 %v1068
      %v1093 = vunpack.c.l.b16 %v1069
      %v1094 = vunpack.c.l.b16 %v1070
      %v1095 = vunpack.c.l.b16 %v1071
      %v1096 = vunpack.c.l.b16 %v1072
      %v1097 = vunpack.c.l.b16 %v1073
      %v1098 = vunpack.c.l.b16 %v1074
      %v1099 = vunpack.c.l.b16 %v1075
      %v1100 = vunpack.c.l.b16 %v1076
      %v1101 = vunpack.c.l.b16 %v1077
      %v1102 = vpack.c.b16 %v1091, %v1090
      %v1103 = vpack.c.b16 %v1093, %v1092
      %v1104 = vpack.c.b16 %v1095, %v1094
      %v1105 = vpack.c.b16 %v1097, %v1096
      %v1106 = vpack.c.b16 %v1099, %v1098
      %v1107 = vpack.c.b16 %v1101, %v1100
      %v1115 = vsel %vm641, %v1065, 0
      %1117 = vmatprep.subr.bf16.mxu0 0
      %1118 = vmatpush1.bf16.msra.mxu0 %v1102
      %1119 = vmatprep.subr.bf16.mxu0 0
      %1120 = vmatpush1.bf16.msra.mxu0 %v1103
      %1121 = vmatprep.subr.bf16.mxu0 0
      %1122 = vmatpush1.bf16.msra.mxu0 %v1104
      %1123 = vmatprep.subr.bf16.mxu0 0
      %1124 = vmatpush1.bf16.msra.mxu0 %v1105
      %1125 = vmatprep.subr.bf16.mxu0 0
      %1126 = vmatpush1.bf16.msra.mxu0 %v1106
      %1127 = vmatprep.subr.bf16.mxu0 0
      %1128 = vmatpush1.bf16.msra.mxu0 %v1107
      %1129 = vmatprep.subr.bf16.mxu0 0
      %1130 = vmatpush1.bf16.msra.mxu0 0
      %1131 = vmatprep.subr.bf16.mxu0 0
      %1132 = vmatpush1.bf16.msra.mxu0 0
      %1133 = vmatprep.subr.bf16.mxu0 0
      %1134 = vmatpush1.bf16.msra.mxu0 0
      %1135 = vmatprep.subr.bf16.mxu0 0
      %1136 = vmatpush1.bf16.msra.mxu0 0
      %1137 = vmatprep.subr.bf16.mxu0 0
      %1138 = vmatpush1.bf16.msra.mxu0 0
      %1139 = vmatprep.subr.bf16.mxu0 0
      %1140 = vmatpush1.bf16.msra.mxu0 0
      %1141 = vmatprep.subr.bf16.mxu0 0
      %1142 = vmatpush1.bf16.msra.mxu0 0
      %1143 = vmatprep.subr.bf16.mxu0 0
      %1144 = vmatpush1.bf16.msra.mxu0 0
      %1145 = vmatprep.subr.bf16.mxu0 0
      %1146 = vmatpush1.bf16.msra.mxu0 0
      %1147 = vmatprep.subr.bf16.mxu0 0
      %1148 = vmatpush1.bf16.msra.mxu0 0
      %1149 = vmatprep.mubr.bf16.mxu0 0
      %1150 = vmatmul.mubr.bf16.gmra.mrb[0].mxu0 %v1115
      %v1151 = vpop.f32.mrb[0].mxu0
      %v1152 = vadd.f32 0.0, %v1151
      %v1153 = vpop.f32.mrb[0].mxu0
      %v1154 = vpop.f32.mrb[0].mxu0
      %v1155 = vadd.f32 0.0, %v1154
      %v1156 = vpop.f32.mrb[0].mxu0
      %1157 = vdwg.mxu0
      %v1158 = vld [vmem:[%s8] sm:$0x1]
      %v1160 = vlaneseq
      %v1161 = vshrl.u32 %v1160, 7
      %v1162 = vsub.s32 0, %v1161
      %v1163 = vrot.slane %v1158, %v1162
      %v1165 = vmul.f32 %v1152, %v1163
      %v1166 = vmul.f32 %v1155, %v1163
      %v1167 = vld [vmem:[%s9] sm:$0x1]
      %v1169 = vlaneseq
      %v1170 = vshrl.u32 %v1169, 7
      %v1171 = vsub.s32 0, %v1170
      %v1172 = vrot.slane %v1167, %v1171
      %v1174 = vadd.f32 %v1165, %v1172
      %v1175 = vadd.f32 %v1166, %v1172
      %vm1176 = vcmp.ge.f32.partialorder %v1174, 0.0
      %vm1177 = vcmp.ge.f32.partialorder %v1175, 0.0
      %v1178 = vmul.f32 %v1174, 0.3
      %v1179 = vmul.f32 %v1175, 0.3
      %v1180 = vsel %vm1176, %v1174, %v1178
      %v1181 = vsel %vm1177, %v1175, %v1179
      %1182 = vst.msk [vmem:[#allocation2] sm:$0xff] %vm444, 0.0
      %1183 = vst.msk [vmem:[#allocation2 + $0x8] sm:$0xff] %vm444, 0.0
      %1184 = vst.msk [vmem:[#allocation2 + $0x10] sm:$0x3f] %vm447, 0.0
      %1185 = vst.msk [vmem:[#allocation2 + $0x1] sm:$0xff] %vm449, %v1180
      %1186 = vst.msk [vmem:[#allocation2 + $0x9] sm:$0xff] %vm449, %v1181
      %v1187 = vld [vmem:[#allocation2] sm:$0xff]
      %v1188 = vld [vmem:[#allocation2 + $0x8] sm:$0xff]
      %1189 = vst.msk [vmem:[#allocation3] sm:$0xff] %vm449, %v1187
      %1190 = vst.msk [vmem:[#allocation3 + $0x18] sm:$0xff] %vm449, %v1188
      %v1191 = vld [vmem:[#allocation2 + $0x1] sm:$0xff]
      %v1192 = vld [vmem:[#allocation2 + $0x9] sm:$0xff]
      %1195 = vrot.lane.b32.xlu0 %v1191, 32
      %v1196 = vpop.permute.xlu0 %1195
      %1197 = vrot.lane.b32.xlu0 %v1192, 32
      %v1198 = vpop.permute.xlu0 %1197
      %1201 = vst.msk [vmem:[#allocation3] sm:$0xff] %vm466, %v1196
      %1202 = vst.msk [vmem:[#allocation3 + $0x18] sm:$0xff] %vm466, %v1198
      %v1203 = vld [vmem:[#allocation2 + $0x2] sm:$0xff]
      %v1204 = vld [vmem:[#allocation2 + $0xa] sm:$0xff]
      %1207 = vrot.lane.b32.xlu0 %v1203, 64
      %v1208 = vpop.permute.xlu0 %1207
      %1209 = vrot.lane.b32.xlu0 %v1204, 64
      %v1210 = vpop.permute.xlu0 %1209
      %1213 = vst.msk [vmem:[#allocation3] sm:$0xff] %vm479, %v1208
      %1214 = vst.msk [vmem:[#allocation3 + $0x18] sm:$0xff] %vm479, %v1210
      %v1215 = vld [vmem:[#allocation3] sm:$0xff]
      %v1216 = vld [vmem:[#allocation3 + $0x18] sm:$0xff]
      %v1217 = vpack.c.bf16 %v1216, %v1215
      %v1218 = vld [vmem:[%s10] sm:$0xf]
      %v1219 = vld [vmem:[%s10 + $0x4] sm:$0xf]
      %v1220 = vld [vmem:[%s10 + $0x8] sm:$0xf]
      %v1221 = vld [vmem:[%s10 + $0xc] sm:$0xf]
      %v1222 = vld [vmem:[%s10 + $0x10] sm:$0xf]
      %v1223 = vld [vmem:[%s10 + $0x14] sm:$0xf]
      %v1224 = vld [vmem:[%s10 + $0x18] sm:$0xf]
      %v1225 = vld [vmem:[%s10 + $0x1c] sm:$0xf]
      %v1226 = vld [vmem:[%s10 + $0x20] sm:$0xf]
      %v1227 = vld [vmem:[%s10 + $0x24] sm:$0xf]
      %v1228 = vld [vmem:[%s10 + $0x28] sm:$0xf]
      %v1229 = vld [vmem:[%s10 + $0x2c] sm:$0xf]
      %v1242 = vunpack.c.l.b16 %v1218
      %v1243 = vunpack.c.l.b16 %v1219
      %v1244 = vunpack.c.l.b16 %v1220
      %v1245 = vunpack.c.l.b16 %v1221
      %v1246 = vunpack.c.l.b16 %v1222
      %v1247 = vunpack.c.l.b16 %v1223
      %v1248 = vunpack.c.l.b16 %v1224
      %v1249 = vunpack.c.l.b16 %v1225
      %v1250 = vunpack.c.l.b16 %v1226
      %v1251 = vunpack.c.l.b16 %v1227
      %v1252 = vunpack.c.l.b16 %v1228
      %v1253 = vunpack.c.l.b16 %v1229
      %v1254 = vpack.c.b16 %v1243, %v1242
      %v1255 = vpack.c.b16 %v1245, %v1244
      %v1256 = vpack.c.b16 %v1247, %v1246
      %v1257 = vpack.c.b16 %v1249, %v1248
      %v1258 = vpack.c.b16 %v1251, %v1250
      %v1259 = vpack.c.b16 %v1253, %v1252
      %v1267 = vsel %vm641, %v1217, 0
      %1269 = vmatprep.subr.bf16.mxu0 0
      %1270 = vmatpush1.bf16.msra.mxu0 %v1254
      %1271 = vmatprep.subr.bf16.mxu0 0
      %1272 = vmatpush1.bf16.msra.mxu0 %v1255
      %1273 = vmatprep.subr.bf16.mxu0 0
      %1274 = vmatpush1.bf16.msra.mxu0 %v1256
      %1275 = vmatprep.subr.bf16.mxu0 0
      %1276 = vmatpush1.bf16.msra.mxu0 %v1257
      %1277 = vmatprep.subr.bf16.mxu0 0
      %1278 = vmatpush1.bf16.msra.mxu0 %v1258
      %1279 = vmatprep.subr.bf16.mxu0 0
      %1280 = vmatpush1.bf16.msra.mxu0 %v1259
      %1281 = vmatprep.subr.bf16.mxu0 0
      %1282 = vmatpush1.bf16.msra.mxu0 0
      %1283 = vmatprep.subr.bf16.mxu0 0
      %1284 = vmatpush1.bf16.msra.mxu0 0
      %1285 = vmatprep.subr.bf16.mxu0 0
      %1286 = vmatpush1.bf16.msra.mxu0 0
      %1287 = vmatprep.subr.bf16.mxu0 0
      %1288 = vmatpush1.bf16.msra.mxu0 0
      %1289 = vmatprep.subr.bf16.mxu0 0
      %1290 = vmatpush1.bf16.msra.mxu0 0
      %1291 = vmatprep.subr.bf16.mxu0 0
      %1292 = vmatpush1.bf16.msra.mxu0 0
      %1293 = vmatprep.subr.bf16.mxu0 0
      %1294 = vmatpush1.bf16.msra.mxu0 0
      %1295 = vmatprep.subr.bf16.mxu0 0
      %1296 = vmatpush1.bf16.msra.mxu0 0
      %1297 = vmatprep.subr.bf16.mxu0 0
      %1298 = vmatpush1.bf16.msra.mxu0 0
      %1299 = vmatprep.subr.bf16.mxu0 0
      %1300 = vmatpush1.bf16.msra.mxu0 0
      %1301 = vmatprep.mubr.bf16.mxu0 0
      %1302 = vmatmul.mubr.bf16.gmra.mrb[0].mxu0 %v1267
      %v1303 = vpop.f32.mrb[0].mxu0
      %v1304 = vadd.f32 0.0, %v1303
      %v1305 = vpop.f32.mrb[0].mxu0
      %v1306 = vpop.f32.mrb[0].mxu0
      %v1307 = vadd.f32 0.0, %v1306
      %v1308 = vpop.f32.mrb[0].mxu0
      %1309 = vdwg.mxu0
      %v1310 = vld [vmem:[%s11] sm:$0x1]
      %v1312 = vlaneseq
      %v1313 = vshrl.u32 %v1312, 7
      %v1314 = vsub.s32 0, %v1313
      %v1315 = vrot.slane %v1310, %v1314
      %v1317 = vmul.f32 %v1304, %v1315
      %v1318 = vmul.f32 %v1307, %v1315
      %v1319 = vld [vmem:[%s12] sm:$0x1]
      %v1321 = vlaneseq
      %v1322 = vshrl.u32 %v1321, 7
      %v1323 = vsub.s32 0, %v1322
      %v1324 = vrot.slane %v1319, %v1323
      %v1326 = vadd.f32 %v1317, %v1324
      %v1327 = vadd.f32 %v1318, %v1324
      %vm1328 = vcmask 130048
      %1329 = vst.msk [vmem:[%s440] sm:$0xff] %vm1328, %v1326
      %1330 = vst.msk [vmem:[%s440 + $0x8] sm:$0xff] %vm1328, %v1327
      %p1331 = scmp.lt.s32.totalorder %s24, 1
      %s1332 = scalar_select %p1331, %s24, 1
      %s1333 = smul.addr %s1332, 2
      %s1334 = smul.addr %s1333, 8
      %s1335 = scalar_lea.vmem %s13, %s1334
      // Predicated region
      $region73: #{beamform_net_forward.1} parent=71 // pred_check
        %p1336 = pneg %p320
      $region74: #{beamform_net_forward.1} parent=71 // pred_check_branch
        %1338 = sbr.rel (%p1336) target = $region76
      $region75: #{beamform_net_forward.1} parent=71 // pred_region
        _
      $region76: #{beamform_net_forward.1} parent=71 // pred_fallthru
        _
    $region72: #{beamform_net_forward.1} parent=5 // pred_fallthru
      _
    %p1339 = scmp.le.s32.totalorder 2, %s19
    // Predicated region
    $region77: #{beamform_net_forward.1} parent=5 // pred_check
      %p1340 = pneg %p1339
    $region78: #{beamform_net_forward.1} parent=5 // pred_check_branch
      %1342 = sbr.rel (%p1340) target = $region80
    $region79: #{beamform_net_forward.1} parent=5 // pred_region
      %s1343 = ssub.s32 %s19, 2
      // Predicated region
      $region81: #{beamform_net_forward.1} parent=79 // pred_check
        %p1344 = pneg %p326
      $region82: #{beamform_net_forward.1} parent=79 // pred_check_branch
        %1346 = sbr.rel (%p1344) target = $region84
      $region83: #{beamform_net_forward.1} parent=79 // pred_region
        %p1347 = scmp.lt.s32.totalorder %s25, 1
        %s1348 = scalar_select %p1347, %s25, 1
        %s1349 = smul.addr %s1348, 2
        %s1350 = smul.addr %s1349, 8
        %s1351 = scalar_lea.vmem %s13, %s1350
      $region84: #{beamform_net_forward.1} parent=79 // pred_fallthru
        _
    $region80: #{beamform_net_forward.1} parent=5 // pred_fallthru
      _
  $region6: #{beamform_net_forward.1} parent=0 // loop_footer
    %s23 = sadd.s32 1, %s19
  $region7: #{beamform_net_forward.1} parent=0 // loop_footer_branch
    %18 = sbr.rel target = $region3
  $region8: #{beamform_net_forward.1} parent=0 // loop_exit
    _

</llo_original>
